<compile_context>
chip_gen: v7x
topology: tpu7x:2x2x1
jax: 0.10.0
libtpu: 0.0.40
codegen_flags: <defaults>
</compile_context>

<pallas_src>
import functools

import jax
import jax.numpy as jnp
from jax import lax
from jax.experimental import pallas as pl
from jax.experimental.pallas import tpu as pltpu


def _round_up(x, m):
    return ((x + m - 1) // m) * m


def _vmem_capacity_bytes():
    try:
        return int(pltpu.get_tpu_info().vmem_capacity_bytes)
    except Exception:
        return 64 * 1024 * 1024  # conservative (v7x per-TensorCore)


def _default_tm(T):
    # Token-tile target so weight re-streaming per token tile sits above the
    # MXU/HBM crossover: v6e/v5e (128 MiB VMEM) -> 1024, v7x (64 MiB) -> 512.
    cap = _vmem_capacity_bytes()
    tm_target = 512 if cap <= (64 << 20) else 1024
    return min(tm_target, _round_up(max(T, 1), 16))


def _vmem_limit_bytes(tm, ti, H, x_itemsize, w_itemsize, out_itemsize):
    x_buf = 2 * tm * H * x_itemsize            # budget 2x even if Buffered(1)
    wgu_buf = 2 * H * (2 * ti) * w_itemsize    # fused gate/up stream (double buf)
    wd_buf = 2 * ti * H * w_itemsize           # down stream (double buf)
    out_buf = 2 * tm * H * out_itemsize
    acc = tm * H * 4                           # f32 accumulator scratch
    temps = tm * (2 * ti) * 4 + tm * ti * x_itemsize
    total = x_buf + wgu_buf + wd_buf + out_buf + acc + temps
    cap = _vmem_capacity_bytes()
    limit = int(total * 1.25) + (2 << 20)      # headroom for compiler temps
    return max(32 << 20, min(limit, cap - (4 << 20)))


# ------------------------------ fused kernel -------------------------------

def _mlp_kernel(x_ref, wgu_ref, wd_ref, o_ref, acc_ref, *, ti):
    i = pl.program_id(1)

    @pl.when(i == 0)
    def _():
        acc_ref[...] = jnp.zeros_like(acc_ref)

    x = x_ref[...]
    # One fused gate/up projection for this intermediate tile: (tm, 2*ti),
    # gate columns in the first ti lanes, up columns in the last ti lanes.
    gu = jnp.dot(x, wgu_ref[...], preferred_element_type=jnp.float32)
    gate = gu[:, :ti]
    up = gu[:, ti:]
    # SiLU(gate) * up in f32 (logistic -> EUP slot), cast back to feed the MXU.
    act = (gate * lax.logistic(gate) * up).astype(x_ref.dtype)
    # Partial down projection for this slice of the reduction axis.
    partial = jnp.dot(act, wd_ref[...], preferred_element_type=jnp.float32)

    is_last = i == pl.num_programs(1) - 1

    @pl.when(jnp.logical_not(is_last))
    def _():
        acc_ref[...] += partial

    @pl.when(is_last)
    def _():
        # Write output directly from acc + final partial (skip acc store/reload).
        o_ref[...] = (acc_ref[...] + partial).astype(o_ref.dtype)


def llama_mlp(x, gate_up_w, down_w, *, ti, tm=None, vmem_limit_bytes=None):
    """Fused LlamaMLP forward.

    x:          (T, H)       activations (bf16 recommended)
    gate_up_w:  (H, 2 * Ip)  gate/up weights interleaved at `ti` granularity
                             (from prepare_weights; Ip padded to a multiple of ti)
    down_w:     (Ip, H)      down_proj weight in (in, out) layout
    ti:         intermediate tile width (must match prepare_weights)
    """
    T, H = x.shape
    Hw, two_ip = gate_up_w.shape
    Ip, Hd = down_w.shape
    assert Hw == H and Hd == H and two_ip == 2 * Ip and Ip % ti == 0

    if tm is None:
        tm = _default_tm(T)
    tm = _round_up(max(16, min(tm, _round_up(T, 16))), 16)
    Tp = _round_up(T, tm)
    if Tp != T:
        x = jnp.pad(x, ((0, Tp - T), (0, 0)))

    n_t, n_i = Tp // tm, Ip // ti

    if vmem_limit_bytes is None:
        vmem_limit_bytes = _vmem_limit_bytes(
            tm, ti, H, x.dtype.itemsize, gate_up_w.dtype.itemsize, x.dtype.itemsize)

    w_bytes = (gate_up_w.size * gate_up_w.dtype.itemsize
               + down_w.size * down_w.dtype.itemsize)
    cost = pl.CostEstimate(
        flops=6 * Tp * H * Ip,
        transcendentals=Tp * Ip,
        bytes_accessed=int(x.size * x.dtype.itemsize
                           + n_t * w_bytes          # weights re-streamed per token tile
                           + Tp * H * x.dtype.itemsize),
    )

    kernel = functools.partial(_mlp_kernel, ti=ti)

    def _in_specs(buffered_x):
        x_map = lambda t, i: (t, 0)
        if buffered_x:
            # x block index is constant over the inner i axis -> single buffer.
            x_spec = pl.BlockSpec((tm, H), x_map, pipeline_mode=pl.Buffered(1))
        else:
            x_spec = pl.BlockSpec((tm, H), x_map)
        return [
            x_spec,                                          # x tile (resident over i)
            pl.BlockSpec((H, 2 * ti), lambda t, i: (0, i)),  # fused gate/up stream
            pl.BlockSpec((ti, H), lambda t, i: (i, 0)),      # down weight stream
        ]

    def _run(buffered_x):
        return pl.pallas_call(
            kernel,
            grid=(n_t, n_i),
            in_specs=_in_specs(buffered_x),
            out_specs=pl.BlockSpec((tm, H), lambda t, i: (t, 0)),
            out_shape=jax.ShapeDtypeStruct((Tp, H), x.dtype),
            scratch_shapes=[pltpu.VMEM((tm, H), jnp.float32)],
            compiler_params=pltpu.CompilerParams(
                dimension_semantics=("parallel", "arbitrary"),
                vmem_limit_bytes=vmem_limit_bytes,
            ),
            cost_estimate=cost,
        )(x, gate_up_w, down_w)

    try:
        out = _run(buffered_x=True)
    except Exception:  # fall back if Buffered(1) pipeline_mode is unsupported
        out = _run(buffered_x=False)
    return out[:T]


# ------------------------- load-time weight prep ----------------------------

def prepare_weights(gate_up_proj_weight, down_proj_weight, *, ti=256,
                    dtype=jnp.bfloat16):
    """One-time transform from torch nn.Linear (out, in) weights to the layouts
    used by llama_mlp: transpose to (in, out), pad the intermediate dim to a
    multiple of ti (zero padding is exact: silu(0)*0 == 0 and padded down rows
    multiply zero activations), and interleave gate/up columns at ti granularity
    so each (H, 2*ti) block of gate_up_w holds the matching gate+up columns."""
    two_i, h = gate_up_proj_weight.shape
    i_size = two_i // 2
    gate_w = jnp.transpose(gate_up_proj_weight[:i_size]).astype(dtype)   # (H, I)
    up_w = jnp.transpose(gate_up_proj_weight[i_size:]).astype(dtype)     # (H, I)
    down_w = jnp.transpose(down_proj_weight).astype(dtype)               # (I, H)

    i_pad = _round_up(i_size, ti)
    if i_pad != i_size:
        gate_w = jnp.pad(gate_w, ((0, 0), (0, i_pad - i_size)))
        up_w = jnp.pad(up_w, ((0, 0), (0, i_pad - i_size)))
        down_w = jnp.pad(down_w, ((0, i_pad - i_size), (0, 0)))

    n = i_pad // ti
    gate_up_w = jnp.concatenate(
        [gate_w.reshape(h, n, ti), up_w.reshape(h, n, ti)], axis=-1
    ).reshape(h, 2 * i_pad)
    return gate_up_w, down_w


# ----------------------------------- demo -----------------------------------

if __name__ == "__main__":
    T, H, I = 40, 256, 512          # small toy shapes (H, I multiples of 128)
    TI = 128                        # intermediate tile / interleave width

    key = jax.random.PRNGKey(0)
    kx, kg, kd = jax.random.split(key, 3)
    x = jax.random.uniform(kx, (T, H), jnp.float32, -1.0, 1.0)
    # torch nn.Linear layout: (out_features, in_features)
    gate_up_proj_weight = jax.random.uniform(
        kg, (2 * I, H), jnp.float32, -1.0, 1.0) / (H ** 0.5)
    down_proj_weight = jax.random.uniform(
        kd, (H, I), jnp.float32, -1.0, 1.0) / (I ** 0.5)

    gate_up_w, down_w = prepare_weights(gate_up_proj_weight, down_proj_weight, ti=TI)
    x_bf16 = x.astype(jnp.bfloat16)

    # Explicit small tiles: grid (3, 4) exercises token padding (40 -> 48),
    # the K-accumulation loop and the fused epilogue write.
    out = jax.block_until_ready(llama_mlp(x_bf16, gate_up_w, down_w, ti=TI, tm=16))
    # Auto-configured tiles (per-generation defaults + derived vmem limit).
    out_auto = jax.block_until_ready(llama_mlp(x_bf16, gate_up_w, down_w, ti=TI))

    # Pure-JAX reference at matched (bf16 weights / bf16 input) precision.
    xf = x_bf16.astype(jnp.float32)
    gate_w_f = jnp.transpose(gate_up_proj_weight[:I]).astype(jnp.bfloat16).astype(jnp.float32)
    up_w_f = jnp.transpose(gate_up_proj_weight[I:]).astype(jnp.bfloat16).astype(jnp.float32)
    down_w_f = jnp.transpose(down_proj_weight).astype(jnp.bfloat16).astype(jnp.float32)
    gate = xf @ gate_w_f
    up = xf @ up_w_f
    ref = (gate * jax.nn.sigmoid(gate) * up) @ down_w_f

    scale = float(jnp.max(jnp.abs(ref)))
    for name, o in (("tiled", out), ("auto", out_auto)):
        err = float(jnp.max(jnp.abs(o.astype(jnp.float32) - ref)))
        if not (err <= 0.05 * scale + 1e-3):
            raise SystemExit(f"{name} mismatch: max_err={err}, ref_scale={scale}")

    print("KERNEL_OK")
</pallas_src>

<mosaic_0001>
module attributes {stable_mosaic.version = 11 : i64} {
  func.func @_mlp_kernel(%arg0: i32, %arg1: i32, %arg2: memref<16x256xbf16, #tpu.memory_space<vmem>>, %arg3: memref<256x256xbf16, #tpu.memory_space<vmem>>, %arg4: memref<128x256xbf16, #tpu.memory_space<vmem>>, %arg5: memref<16x256xbf16, #tpu.memory_space<vmem>>, %arg6: memref<16x256xf32, #tpu.memory_space<vmem>>) attributes {dimension_semantics = [#tpu.dimension_semantics<parallel>, #tpu.dimension_semantics<arbitrary>], iteration_bounds = array<i64: 3, 4>, scalar_prefetch = 0 : i64, scratch_operands = 1 : i64, tpu.core_type = #tpu.core_type<tc>, window_params = [{pipeline_mode = #tpu.pipeline_mode<synchronous>, transform_indices = @transform_0, window_bounds = array<i64: 16, 256>}, {transform_indices = @transform_1, window_bounds = array<i64: 256, 256>}, {transform_indices = @transform_2, window_bounds = array<i64: 128, 256>}, {transform_indices = @transform_3, window_bounds = array<i64: 16, 256>}]} {
    %c0_i32 = arith.constant 0 : i32
    %0 = arith.cmpi eq, %arg1, %c0_i32 : i32
    %1 = arith.extui %0 : i1 to i32
    %c0_i32_0 = arith.constant 0 : i32
    %2 = arith.cmpi ne, %1, %c0_i32_0 : i32
    scf.if %2 {
      %cst_10 = arith.constant 0.000000e+00 : f32
      %24 = vector.broadcast %cst_10 : f32 to vector<16x256xf32>
      %c0_11 = arith.constant 0 : index
      %c0_12 = arith.constant 0 : index
      %25 = vector.load %arg6[%c0_11, %c0_12] : memref<16x256xf32, #tpu.memory_space<vmem>>, vector<16x256xf32>
      tpu.vector_store %arg6[%c0_11, %c0_12], %24 {strides = array<i32>} : memref<16x256xf32, #tpu.memory_space<vmem>>, vector<16x256xf32>,
    } else {
    }
    %c0 = arith.constant 0 : index
    %c0_1 = arith.constant 0 : index
    %3 = vector.load %arg2[%c0, %c0_1] : memref<16x256xbf16, #tpu.memory_space<vmem>>, vector<16x256xbf16>
    %c0_2 = arith.constant 0 : index
    %c0_3 = arith.constant 0 : index
    %4 = vector.load %arg3[%c0_2, %c0_3] : memref<256x256xbf16, #tpu.memory_space<vmem>>, vector<256x256xbf16>
    %cst = arith.constant dense<0.000000e+00> : vector<16x256xf32>
    %5 = tpu.matmul %3, %4, %cst {dimension_numbers = #tpu.dot_dimension_numbers<[1], [0], [0], [1], [0, 0, 1, 1], [], []>} : vector<16x256xbf16>, vector<256x256xbf16>, vector<16x256xf32> -> vector<16x256xf32>
    %6 = vector.extract_strided_slice %5 {offsets = [0, 0], sizes = [16, 128], strides = [1, 1]} : vector<16x256xf32> to vector<16x128xf32>
    %7 = vector.extract_strided_slice %5 {offsets = [0, 128], sizes = [16, 128], strides = [1, 1]} : vector<16x256xf32> to vector<16x128xf32>
    %8 = arith.negf %6 : vector<16x128xf32>
    %9 = math.exp %8 : vector<16x128xf32>
    %cst_4 = arith.constant 1.000000e+00 : f32
    %10 = vector.broadcast %cst_4 : f32 to vector<16x128xf32>
    %11 = arith.addf %10, %9 : vector<16x128xf32>
    %12 = arith.divf %10, %11 : vector<16x128xf32>
    %13 = arith.mulf %6, %12 : vector<16x128xf32>
    %14 = arith.mulf %13, %7 : vector<16x128xf32>
    %15 = arith.truncf %14 : vector<16x128xf32> to vector<16x128xbf16>
    %c0_5 = arith.constant 0 : index
    %c0_6 = arith.constant 0 : index
    %16 = vector.load %arg4[%c0_5, %c0_6] : memref<128x256xbf16, #tpu.memory_space<vmem>>, vector<128x256xbf16>
    %cst_7 = arith.constant dense<0.000000e+00> : vector<16x256xf32>
    %17 = tpu.matmul %15, %16, %cst_7 {dimension_numbers = #tpu.dot_dimension_numbers<[1], [0], [0], [1], [0, 0, 1, 1], [], []>} : vector<16x128xbf16>, vector<128x256xbf16>, vector<16x256xf32> -> vector<16x256xf32>
    %c3_i32 = arith.constant 3 : i32
    %18 = arith.cmpi eq, %arg1, %c3_i32 : i32
    %true = arith.constant true
    %19 = arith.xori %18, %true : i1
    %20 = arith.extui %19 : i1 to i32
    %c0_i32_8 = arith.constant 0 : i32
    %21 = arith.cmpi ne, %20, %c0_i32_8 : i32
    scf.if %21 {
      %c0_10 = arith.constant 0 : index
      %c0_11 = arith.constant 0 : index
      %24 = vector.load %arg6[%c0_10, %c0_11] : memref<16x256xf32, #tpu.memory_space<vmem>>, vector<16x256xf32>
      %25 = arith.addf %24, %17 : vector<16x256xf32>
      %c0_12 = arith.constant 0 : index
      %c0_13 = arith.constant 0 : index
      %26 = vector.load %arg6[%c0_12, %c0_13] : memref<16x256xf32, #tpu.memory_space<vmem>>, vector<16x256xf32>
      tpu.vector_store %arg6[%c0_12, %c0_13], %25 {strides = array<i32>} : memref<16x256xf32, #tpu.memory_space<vmem>>, vector<16x256xf32>,
    } else {
    }
    %22 = arith.extui %18 : i1 to i32
    %c0_i32_9 = arith.constant 0 : i32
    %23 = arith.cmpi ne, %22, %c0_i32_9 : i32
    scf.if %23 {
      %c0_10 = arith.constant 0 : index
      %c0_11 = arith.constant 0 : index
      %24 = vector.load %arg6[%c0_10, %c0_11] : memref<16x256xf32, #tpu.memory_space<vmem>>, vector<16x256xf32>
      %25 = arith.addf %24, %17 : vector<16x256xf32>
      %26 = arith.truncf %25 : vector<16x256xf32> to vector<16x256xbf16>
      %c0_12 = arith.constant 0 : index
      %c0_13 = arith.constant 0 : index
      %27 = vector.load %arg5[%c0_12, %c0_13] : memref<16x256xbf16, #tpu.memory_space<vmem>>, vector<16x256xbf16>
      tpu.vector_store %arg5[%c0_12, %c0_13], %26 {strides = array<i32>} : memref<16x256xbf16, #tpu.memory_space<vmem>>, vector<16x256xbf16>,
    } else {
    }
    return
  }
  func.func @transform_0(%arg0: i32, %arg1: i32) -> (i32, i32) {
    %c0_i32 = arith.constant 0 : i32
    %c0_i32_0 = arith.constant 0 : i32
    return %arg0, %c0_i32 : i32, i32
  }
  func.func @transform_1(%arg0: i32, %arg1: i32) -> (i32, i32) {
    %c0_i32 = arith.constant 0 : i32
    %c0_i32_0 = arith.constant 0 : i32
    return %c0_i32, %arg1 : i32, i32
  }
  func.func @transform_2(%arg0: i32, %arg1: i32) -> (i32, i32) {
    %c0_i32 = arith.constant 0 : i32
    %c0_i32_0 = arith.constant 0 : i32
    return %arg1, %c0_i32 : i32, i32
  }
  func.func @transform_3(%arg0: i32, %arg1: i32) -> (i32, i32) {
    %c0_i32 = arith.constant 0 : i32
    %c0_i32_0 = arith.constant 0 : i32
    return %arg0, %c0_i32 : i32, i32
  }
}

module attributes {stable_mosaic.version = 11 : i64} {
  func.func @_mlp_kernel(%arg0: i32, %arg1: i32, %arg2: memref<16x256xbf16, #tpu.memory_space<vmem>>, %arg3: memref<256x256xbf16, #tpu.memory_space<vmem>>, %arg4: memref<128x256xbf16, #tpu.memory_space<vmem>>, %arg5: memref<16x256xbf16, #tpu.memory_space<vmem>>, %arg6: memref<16x256xf32, #tpu.memory_space<vmem>>) attributes {dimension_semantics = [#tpu.dimension_semantics<parallel>, #tpu.dimension_semantics<arbitrary>], iteration_bounds = array<i64: 3, 4>, scalar_prefetch = 0 : i64, scratch_operands = 1 : i64, tpu.core_type = #tpu.core_type<tc>, window_params = [{transform_indices = @transform_0, window_bounds = array<i64: 16, 256>}, {transform_indices = @transform_1, window_bounds = array<i64: 256, 256>}, {transform_indices = @transform_2, window_bounds = array<i64: 128, 256>}, {transform_indices = @transform_3, window_bounds = array<i64: 16, 256>}]} {
    %c0_i32 = arith.constant 0 : i32
    %0 = arith.cmpi eq, %arg1, %c0_i32 : i32
    %1 = arith.extui %0 : i1 to i32
    %c0_i32_0 = arith.constant 0 : i32
    %2 = arith.cmpi ne, %1, %c0_i32_0 : i32
    scf.if %2 {
      %cst_10 = arith.constant 0.000000e+00 : f32
      %24 = vector.broadcast %cst_10 : f32 to vector<16x256xf32>
      %c0_11 = arith.constant 0 : index
      %c0_12 = arith.constant 0 : index
      %25 = vector.load %arg6[%c0_11, %c0_12] : memref<16x256xf32, #tpu.memory_space<vmem>>, vector<16x256xf32>
      tpu.vector_store %arg6[%c0_11, %c0_12], %24 {strides = array<i32>} : memref<16x256xf32, #tpu.memory_space<vmem>>, vector<16x256xf32>,
    } else {
    }
    %c0 = arith.constant 0 : index
    %c0_1 = arith.constant 0 : index
    %3 = vector.load %arg2[%c0, %c0_1] : memref<16x256xbf16, #tpu.memory_space<vmem>>, vector<16x256xbf16>
    %c0_2 = arith.constant 0 : index
    %c0_3 = arith.constant 0 : index
    %4 = vector.load %arg3[%c0_2, %c0_3] : memref<256x256xbf16, #tpu.memory_space<vmem>>, vector<256x256xbf16>
    %cst = arith.constant dense<0.000000e+00> : vector<16x256xf32>
    %5 = tpu.matmul %3, %4, %cst {dimension_numbers = #tpu.dot_dimension_numbers<[1], [0], [0], [1], [0, 0, 1, 1], [], []>} : vector<16x256xbf16>, vector<256x256xbf16>, vector<16x256xf32> -> vector<16x256xf32>
    %6 = vector.extract_strided_slice %5 {offsets = [0, 0], sizes = [16, 128], strides = [1, 1]} : vector<16x256xf32> to vector<16x128xf32>
    %7 = vector.extract_strided_slice %5 {offsets = [0, 128], sizes = [16, 128], strides = [1, 1]} : vector<16x256xf32> to vector<16x128xf32>
    %8 = arith.negf %6 : vector<16x128xf32>
    %9 = math.exp %8 : vector<16x128xf32>
    %cst_4 = arith.constant 1.000000e+00 : f32
    %10 = vector.broadcast %cst_4 : f32 to vector<16x128xf32>
    %11 = arith.addf %10, %9 : vector<16x128xf32>
    %12 = arith.divf %10, %11 : vector<16x128xf32>
    %13 = arith.mulf %6, %12 : vector<16x128xf32>
    %14 = arith.mulf %13, %7 : vector<16x128xf32>
    %15 = arith.truncf %14 : vector<16x128xf32> to vector<16x128xbf16>
    %c0_5 = arith.constant 0 : index
    %c0_6 = arith.constant 0 : index
    %16 = vector.load %arg4[%c0_5, %c0_6] : memref<128x256xbf16, #tpu.memory_space<vmem>>, vector<128x256xbf16>
    %cst_7 = arith.constant dense<0.000000e+00> : vector<16x256xf32>
    %17 = tpu.matmul %15, %16, %cst_7 {dimension_numbers = #tpu.dot_dimension_numbers<[1], [0], [0], [1], [0, 0, 1, 1], [], []>} : vector<16x128xbf16>, vector<128x256xbf16>, vector<16x256xf32> -> vector<16x256xf32>
    %c3_i32 = arith.constant 3 : i32
    %18 = arith.cmpi eq, %arg1, %c3_i32 : i32
    %true = arith.constant true
    %19 = arith.xori %18, %true : i1
    %20 = arith.extui %19 : i1 to i32
    %c0_i32_8 = arith.constant 0 : i32
    %21 = arith.cmpi ne, %20, %c0_i32_8 : i32
    scf.if %21 {
      %c0_10 = arith.constant 0 : index
      %c0_11 = arith.constant 0 : index
      %24 = vector.load %arg6[%c0_10, %c0_11] : memref<16x256xf32, #tpu.memory_space<vmem>>, vector<16x256xf32>
      %25 = arith.addf %24, %17 : vector<16x256xf32>
      %c0_12 = arith.constant 0 : index
      %c0_13 = arith.constant 0 : index
      %26 = vector.load %arg6[%c0_12, %c0_13] : memref<16x256xf32, #tpu.memory_space<vmem>>, vector<16x256xf32>
      tpu.vector_store %arg6[%c0_12, %c0_13], %25 {strides = array<i32>} : memref<16x256xf32, #tpu.memory_space<vmem>>, vector<16x256xf32>,
    } else {
    }
    %22 = arith.extui %18 : i1 to i32
    %c0_i32_9 = arith.constant 0 : i32
    %23 = arith.cmpi ne, %22, %c0_i32_9 : i32
    scf.if %23 {
      %c0_10 = arith.constant 0 : index
      %c0_11 = arith.constant 0 : index
      %24 = vector.load %arg6[%c0_10, %c0_11] : memref<16x256xf32, #tpu.memory_space<vmem>>, vector<16x256xf32>
      %25 = arith.addf %24, %17 : vector<16x256xf32>
      %26 = arith.truncf %25 : vector<16x256xf32> to vector<16x256xbf16>
      %c0_12 = arith.constant 0 : index
      %c0_13 = arith.constant 0 : index
      %27 = vector.load %arg5[%c0_12, %c0_13] : memref<16x256xbf16, #tpu.memory_space<vmem>>, vector<16x256xbf16>
      tpu.vector_store %arg5[%c0_12, %c0_13], %26 {strides = array<i32>} : memref<16x256xbf16, #tpu.memory_space<vmem>>, vector<16x256xbf16>,
    } else {
    }
    return
  }
  func.func @transform_0(%arg0: i32, %arg1: i32) -> (i32, i32) {
    %c0_i32 = arith.constant 0 : i32
    %c0_i32_0 = arith.constant 0 : i32
    return %arg0, %c0_i32 : i32, i32
  }
  func.func @transform_1(%arg0: i32, %arg1: i32) -> (i32, i32) {
    %c0_i32 = arith.constant 0 : i32
    %c0_i32_0 = arith.constant 0 : i32
    return %c0_i32, %arg1 : i32, i32
  }
  func.func @transform_2(%arg0: i32, %arg1: i32) -> (i32, i32) {
    %c0_i32 = arith.constant 0 : i32
    %c0_i32_0 = arith.constant 0 : i32
    return %arg1, %c0_i32 : i32, i32
  }
  func.func @transform_3(%arg0: i32, %arg1: i32) -> (i32, i32) {
    %c0_i32 = arith.constant 0 : i32
    %c0_i32_0 = arith.constant 0 : i32
    return %arg0, %c0_i32 : i32, i32
  }
}

</mosaic_0001>

<llo_original>
// kernel: tpu_custom_call.1
$region0: #{tpu_custom_call.1}
  #allocation0 [shape = 'u32[]', space=smem, size = 0x4, offset = 0x4, fixed_abs, tag = 'smem constant byte address 0x4 - core index']
  #allocation1 [shape = 'u32[144,128]{1,0:T(1,128)}', space=vmem, size = 0x12000, scoped, tag = 'internal scratch']
  #allocation2 [shape = 'f32[16,256]{1,0:T(8,128)}', space=vmem, size = 0x4000, scoped, tag = 'scratch operand']
  %s0 = inlined_call_operand.hbm [shape: bf16[48,256], index: 0, kind: input, shape index: {}]
  %s1 = inlined_call_operand.hbm [shape: bf16[256,1024], index: 1, kind: input, shape index: {}]
  %s2 = inlined_call_operand.hbm [shape: bf16[512,256], index: 2, kind: input, shape index: {}]
  %s3 = inlined_call_operand.hbm [shape: bf16[48,256], index: 3, kind: output, shape index: {}]
  %s4 = sld [smem:[#allocation0]]
  $region69: #{tpu_custom_call.1} parent=0
    _
  %s6 = ssub.s32 1, %s4
  %s7 = scalar_select 0, %s6, %s4
  $region1: #{tpu_custom_call.1} parent=0
    #allocation3 [shape = 'u8[8192]{0}', space=vmem, size = 0x2000, scoped, tag = 'input window, operand 0, single buffered']
    #allocation4 [shape = 's32[2]{0}', space=sflag, size = 0x8, scoped, tag = 'scoped memory for tpu_custom_call.1']
    #allocation5 [shape = 's32[2]{0}', space=sflag, size = 0x8, scoped, tag = 'scoped memory for tpu_custom_call.1']
    #allocation6 [shape = 'u8[262144]{0}', space=vmem, size = 0x40000, scoped, tag = 'input window, operand 1']
    #allocation7 [shape = 's32[2]{0}', space=sflag, size = 0x8, scoped, tag = 'scoped memory for tpu_custom_call.1']
    #allocation8 [shape = 'u8[131072]{0}', space=vmem, size = 0x20000, scoped, tag = 'input window, operand 2']
    #allocation9 [shape = 'u8[16384]{0}', space=vmem, size = 0x4000, scoped, tag = 'output window, operand 0']
    %8 = vsyncpa [#allocation4], 0
    %9 = vsyncpa [#allocation7], 0
    %s10 = scalar_lea.sflag [#allocation7], 1
    %11 = vsyncpa %s10, 0
    %12 = vsyncpa [#allocation5], 0
    %s13 = scalar_lea.sflag [#allocation5], 1
    %14 = vsyncpa %s13, 0
    loop: start=0, step=1, limit=14
    $region2: #{tpu_custom_call.1} parent=1 // loop_pre_header
      _
    $region3: #{tpu_custom_call.1} parent=1 // loop_header
      %s16 = sphi 0, %s20
      %p17 = scmp.ge.s32.totalorder %s16, 14
      %s23 = sphi 0, %s35
      %s24 = sphi 0, %s31
      %s25 = sphi 0, %s23
      %s26 = sphi 0, %s24
      %s27 = sphi 0, %s25
      %s28 = sphi 0, %s26
      %s38 = sphi 0, %s40
      %s41 = sphi 0, %s38
      %s42 = sphi 0, %s41
      %s58 = sphi 0, %s42
      %s64 = sphi 0, %s66
      %s67 = sphi 0, %s64
      %s68 = sphi 0, %s67
      %s84 = sphi 0, %s68
      %s90 = sphi 0, %s92
      %s93 = sphi 0, %s90
      %s94 = sphi 0, %s93
      %s110 = sphi 0, %s94
      %s116 = sphi 0, %s118
      %s119 = sphi 0, %s116
      %s120 = sphi 0, %s119
      %s136 = sphi 0, %s120
    $region4: #{tpu_custom_call.1} parent=1 // loop_header_branch
      %19 = sbr.rel (%p17) target = $region8
    $region5: #{tpu_custom_call.1} parent=1 // loop_body
      %s21 = ssub.s32 %s16, 1
      %s22 = ssub.s32 %s16, 2
      %s29 = sadd.s32 1, %s24
      %p30 = scmp.ge.s32.totalorder %s29, 4
      %s31 = scalar_select %p30, 0, %s29
      %s32 = sadd.s32 1, %s23
      %s33 = scalar_select %p30, %s32, %s23
      %p34 = scmp.ge.s32.totalorder %s33, 3
      %s35 = scalar_select %p34, 0, %s33
      %s36 = ssub.s32 %s23, %s35
      %p37 = scmp.eq.s32.totalorder %s36, 0
      %s39 = sadd.s32 %s38, 1
      %s40 = scalar_select %p37, %s38, %s39
      %p43 = pneg %p37
      %p44 = scmp.eq.s32.totalorder %s16, 11
      %p45 = por %p43, %p44
      %p46 = scmp.ne.s32.totalorder %s38, %s41
      %p47 = scmp.eq.s32.totalorder %s16, 0
      %p48 = por %p46, %p47
      %p49 = scmp.ne.s32.totalorder %s38, %s41
      %p50 = scmp.eq.s32.totalorder %s21, 11
      %p51 = por %p49, %p50
      %p52 = scmp.ne.s32.totalorder %s41, %s42
      %p53 = scmp.eq.s32.totalorder %s21, 0
      %p54 = por %p52, %p53
      %p55 = scmp.ne.s32.totalorder %s41, %s42
      %p56 = scmp.eq.s32.totalorder %s22, 11
      %p57 = por %p55, %p56
      %p59 = scmp.ne.s32.totalorder %s42, %s58
      %p60 = scmp.eq.s32.totalorder %s22, 0
      %p61 = por %p59, %p60
      %s62 = ssub.s32 %s24, %s31
      %p63 = scmp.eq.s32.totalorder %s62, 0
      %s65 = sadd.s32 %s64, 1
      %s66 = scalar_select %p63, %s64, %s65
      %p69 = pneg %p63
      %p70 = scmp.eq.s32.totalorder %s16, 11
      %p71 = por %p69, %p70
      %p72 = scmp.ne.s32.totalorder %s64, %s67
      %p73 = scmp.eq.s32.totalorder %s16, 0
      %p74 = por %p72, %p73
      %p75 = scmp.ne.s32.totalorder %s64, %s67
      %p76 = scmp.eq.s32.totalorder %s21, 11
      %p77 = por %p75, %p76
      %p78 = scmp.ne.s32.totalorder %s67, %s68
      %p79 = scmp.eq.s32.totalorder %s21, 0
      %p80 = por %p78, %p79
      %p81 = scmp.ne.s32.totalorder %s67, %s68
      %p82 = scmp.eq.s32.totalorder %s22, 11
      %p83 = por %p81, %p82
      %p85 = scmp.ne.s32.totalorder %s68, %s84
      %p86 = scmp.eq.s32.totalorder %s22, 0
      %p87 = por %p85, %p86
      %s88 = ssub.s32 %s24, %s31
      %p89 = scmp.eq.s32.totalorder %s88, 0
      %s91 = sadd.s32 %s90, 1
      %s92 = scalar_select %p89, %s90, %s91
      %p95 = pneg %p89
      %p96 = scmp.eq.s32.totalorder %s16, 11
      %p97 = por %p95, %p96
      %p98 = scmp.ne.s32.totalorder %s90, %s93
      %p99 = scmp.eq.s32.totalorder %s16, 0
      %p100 = por %p98, %p99
      %p101 = scmp.ne.s32.totalorder %s90, %s93
      %p102 = scmp.eq.s32.totalorder %s21, 11
      %p103 = por %p101, %p102
      %p104 = scmp.ne.s32.totalorder %s93, %s94
      %p105 = scmp.eq.s32.totalorder %s21, 0
      %p106 = por %p104, %p105
      %p107 = scmp.ne.s32.totalorder %s93, %s94
      %p108 = scmp.eq.s32.totalorder %s22, 11
      %p109 = por %p107, %p108
      %p111 = scmp.ne.s32.totalorder %s94, %s110
      %p112 = scmp.eq.s32.totalorder %s22, 0
      %p113 = por %p111, %p112
      %s114 = ssub.s32 %s23, %s35
      %p115 = scmp.eq.s32.totalorder %s114, 0
      %s117 = sadd.s32 %s116, 1
      %s118 = scalar_select %p115, %s116, %s117
      %p121 = pneg %p115
      %p122 = scmp.eq.s32.totalorder %s16, 11
      %p123 = por %p121, %p122
      %p124 = scmp.ne.s32.totalorder %s116, %s119
      %p125 = scmp.eq.s32.totalorder %s16, 0
      %p126 = por %p124, %p125
      %p127 = scmp.ne.s32.totalorder %s116, %s119
      %p128 = scmp.eq.s32.totalorder %s21, 11
      %p129 = por %p127, %p128
      %p130 = scmp.ne.s32.totalorder %s119, %s120
      %p131 = scmp.eq.s32.totalorder %s21, 0
      %p132 = por %p130, %p131
      %p133 = scmp.ne.s32.totalorder %s119, %s120
      %p134 = scmp.eq.s32.totalorder %s22, 11
      %p135 = por %p133, %p134
      %p137 = scmp.ne.s32.totalorder %s120, %s136
      %p138 = scmp.eq.s32.totalorder %s22, 0
      %p139 = por %p137, %p138
      %p140 = scmp.le.s32.totalorder 1, %s16
      %p141 = scmp.lt.s32.totalorder %s16, 13
      %p142 = pnand %p140, %p141
      %p143 = pneg %p142
      // Predicated region
      $region9: #{tpu_custom_call.1} parent=5 // pred_check
        _
      $region10: #{tpu_custom_call.1} parent=5 // pred_check_branch
        %145 = sbr.rel (%p142) target = $region12
      $region11: #{tpu_custom_call.1} parent=5 // pred_region
        %s146 = ssub.s32 %s16, 1
        // Predicated region
        $region13: #{tpu_custom_call.1} parent=11 // pred_check
          %p147 = pneg %p54
        $region14: #{tpu_custom_call.1} parent=11 // pred_check_branch
          %149 = sbr.rel (%p147) target = $region16
        $region15: #{tpu_custom_call.1} parent=11 // pred_region
          %s150 = smul.u32 2, %s25
          %s152 = ssub.s32 256, 256
          %153 = vsyncadd [#allocation4], %s152
          %s154 = smul.addr %s150, 2
          %s155 = smul.addr %s154, 64
          %s156 = scalar_lea.hbm %s0, %s155
          %s157 = sshll.u32 [#allocation3], 4
          %s158 = int_to_ptr.vmem [resolvable:$true] %s157
          %163 = dma.hbm_to_vmem [thread:$0]  %s156, 256, %s158, [#allocation4], 128, 128, 8
        $region16: #{tpu_custom_call.1} parent=11 // pred_fallthru
          _
      $region12: #{tpu_custom_call.1} parent=5 // pred_fallthru
        _
      %p164 = scmp.lt.s32.totalorder %s16, 12
      // Predicated region
      $region17: #{tpu_custom_call.1} parent=5 // pred_check
        %p165 = pneg %p164
      $region18: #{tpu_custom_call.1} parent=5 // pred_check_branch
        %167 = sbr.rel (%p165) target = $region20
      $region19: #{tpu_custom_call.1} parent=5 // pred_region
        // Predicated region
        $region21: #{tpu_custom_call.1} parent=19 // pred_check
          %p168 = pneg %p74
        $region22: #{tpu_custom_call.1} parent=19 // pred_check_branch
          %170 = sbr.rel (%p168) target = $region24
        $region23: #{tpu_custom_call.1} parent=19 // pred_region
          %s171 = sand.u32 %s16, 1
          %s172 = scalar_lea.sflag [#allocation7], %s171
          %s173 = sand.u32 %s64, 1
          %s174 = smul.addr %s173, 256
          %s175 = scalar_lea.vmem [#allocation6], %s174
          %s176 = smul.u32 2, %s24
          %s178 = ssub.s32 4096, 4096
          %179 = vsyncadd %s172, %s178
          %s180 = smul.addr %s176, 64
          %s181 = scalar_lea.hbm %s1, %s180
          %s182 = sshll.u32 %s175, 4
          %s183 = int_to_ptr.vmem [resolvable:$true] %s182
          %188 = dma.hbm_to_vmem [thread:$0]  %s181, 4096, %s183, %s172, 512, 128, 8
        $region24: #{tpu_custom_call.1} parent=19 // pred_fallthru
          _
        // Predicated region
        $region25: #{tpu_custom_call.1} parent=19 // pred_check
          %p189 = pneg %p100
        $region26: #{tpu_custom_call.1} parent=19 // pred_check_branch
          %191 = sbr.rel (%p189) target = $region28
        $region27: #{tpu_custom_call.1} parent=19 // pred_region
          %s192 = sand.u32 %s16, 1
          %s193 = scalar_lea.sflag [#allocation7], %s192
          %s194 = sand.u32 %s90, 1
          %s195 = smul.addr %s194, 128
          %s196 = scalar_lea.vmem [#allocation8], %s195
          %s197 = smul.u32 16, %s24
          %s199 = ssub.s32 2048, 2048
          %200 = vsyncadd %s193, %s199
          %s201 = smul.addr %s197, 2
          %s202 = smul.addr %s201, 64
          %s203 = scalar_lea.hbm %s2, %s202
          %s204 = sshll.u32 %s196, 4
          %s205 = int_to_ptr.vmem [resolvable:$true] %s204
          %210 = dma.hbm_to_vmem [thread:$0]  %s203, 2048, %s205, %s193, 128, 128, 8
        $region28: #{tpu_custom_call.1} parent=19 // pred_fallthru
          _
      $region20: #{tpu_custom_call.1} parent=5 // pred_fallthru
        _
      %p211 = scmp.le.s32.totalorder 1, %s16
      %p212 = scmp.lt.s32.totalorder %s16, 13
      %p213 = pnand %p211, %p212
      %p214 = pneg %p213
      // Predicated region
      $region29: #{tpu_custom_call.1} parent=5 // pred_check
        _
      $region30: #{tpu_custom_call.1} parent=5 // pred_check_branch
        %216 = sbr.rel (%p213) target = $region32
      $region31: #{tpu_custom_call.1} parent=5 // pred_region
        %s217 = ssub.s32 %s16, 1
        // Predicated region
        $region33: #{tpu_custom_call.1} parent=31 // pred_check
          %p218 = pneg %p54
        $region34: #{tpu_custom_call.1} parent=31 // pred_check_branch
          %220 = sbr.rel (%p218) target = $region36
        $region35: #{tpu_custom_call.1} parent=31 // pred_region
          %221 = dma.done [#allocation4], 256
        $region36: #{tpu_custom_call.1} parent=31 // pred_fallthru
          _
        %s222 = sand.u32 %s21, 1
        %s223 = scalar_lea.sflag [#allocation7], %s222
        %s224 = sand.u32 %s67, 1
        %s225 = smul.addr %s224, 256
        %s226 = scalar_lea.vmem [#allocation6], %s225
        // Predicated region
        $region37: #{tpu_custom_call.1} parent=31 // pred_check
          %p227 = pneg %p80
        $region38: #{tpu_custom_call.1} parent=31 // pred_check_branch
          %229 = sbr.rel (%p227) target = $region40
        $region39: #{tpu_custom_call.1} parent=31 // pred_region
          %230 = dma.done %s223, 4096
        $region40: #{tpu_custom_call.1} parent=31 // pred_fallthru
          _
        %s231 = sand.u32 %s21, 1
        %s232 = scalar_lea.sflag [#allocation7], %s231
        %s233 = sand.u32 %s93, 1
        %s234 = smul.addr %s233, 128
        %s235 = scalar_lea.vmem [#allocation8], %s234
        // Predicated region
        $region41: #{tpu_custom_call.1} parent=31 // pred_check
          %p236 = pneg %p106
        $region42: #{tpu_custom_call.1} parent=31 // pred_check_branch
          %238 = sbr.rel (%p236) target = $region44
        $region43: #{tpu_custom_call.1} parent=31 // pred_region
          %239 = dma.done %s232, 2048
        $region44: #{tpu_custom_call.1} parent=31 // pred_fallthru
          _
        %p240 = pneg %p54
        %p241 = pneg %p51
        %s242 = sand.u32 %s21, 1
        %s243 = scalar_lea.sflag [#allocation7], %s242
        %s244 = sand.u32 %s67, 1
        %s245 = smul.addr %s244, 256
        %s246 = scalar_lea.vmem [#allocation6], %s245
        %p247 = pneg %p80
        %p248 = pneg %p77
        %s249 = sand.u32 %s21, 1
        %s250 = scalar_lea.sflag [#allocation7], %s249
        %s251 = sand.u32 %s93, 1
        %s252 = smul.addr %s251, 128
        %s253 = scalar_lea.vmem [#allocation8], %s252
        %p254 = pneg %p106
        %p255 = pneg %p103
        %p256 = pneg %p132
        %p257 = pneg %p129
        %s258 = sand.u32 %s119, 1
        %s259 = scalar_lea.sflag [#allocation5], %s258
        %s260 = sand.u32 %s119, 1
        %s261 = smul.addr %s260, 16
        %s262 = scalar_lea.vmem [#allocation9], %s261
        %s263 = smul.u32 2, %s25
        %s264 = smul.u32 2, %s26
        %s265 = smul.u32 16, %s26
        %s266 = smul.u32 2, %s25
        %p268 = scmp.eq.s32.totalorder %s26, 0
        // Predicated region
        $region45: #{tpu_custom_call.1} parent=31 // pred_check
          %p269 = pneg %p268
        $region46: #{tpu_custom_call.1} parent=31 // pred_check_branch
          %271 = sbr.rel (%p269) target = $region48
        $region47: #{tpu_custom_call.1} parent=31 // pred_region
          %272 = vst [vmem:[#allocation2] sm:$0xff] 0.0
          %273 = vst [vmem:[#allocation2 + $0x8] sm:$0xff] 0.0
          %274 = vst [vmem:[#allocation2 + $0x10] sm:$0xff] 0.0
          %275 = vst [vmem:[#allocation2 + $0x18] sm:$0xff] 0.0
        $region48: #{tpu_custom_call.1} parent=31 // pred_fallthru
          _
        %v276 = vld [vmem:[#allocation3] sm:$0xff]
        %v277 = vld [vmem:[#allocation3 + $0x8] sm:$0xff]
        %v278 = vld [vmem:[%s226] sm:$0xff]
        %v279 = vld [vmem:[%s226 + $0x8] sm:$0xff]
        %v280 = vld [vmem:[%s226 + $0x10] sm:$0xff]
        %v281 = vld [vmem:[%s226 + $0x18] sm:$0xff]
        %v282 = vld [vmem:[%s226 + $0x20] sm:$0xff]
        %v283 = vld [vmem:[%s226 + $0x28] sm:$0xff]
        %v284 = vld [vmem:[%s226 + $0x30] sm:$0xff]
        %v285 = vld [vmem:[%s226 + $0x38] sm:$0xff]
        %v286 = vld [vmem:[%s226 + $0x40] sm:$0xff]
        %v287 = vld [vmem:[%s226 + $0x48] sm:$0xff]
        %v288 = vld [vmem:[%s226 + $0x50] sm:$0xff]
        %v289 = vld [vmem:[%s226 + $0x58] sm:$0xff]
        %v290 = vld [vmem:[%s226 + $0x60] sm:$0xff]
        %v291 = vld [vmem:[%s226 + $0x68] sm:$0xff]
        %v292 = vld [vmem:[%s226 + $0x70] sm:$0xff]
        %v293 = vld [vmem:[%s226 + $0x78] sm:$0xff]
        %v294 = vld [vmem:[%s226 + $0x80] sm:$0xff]
        %v295 = vld [vmem:[%s226 + $0x88] sm:$0xff]
        %v296 = vld [vmem:[%s226 + $0x90] sm:$0xff]
        %v297 = vld [vmem:[%s226 + $0x98] sm:$0xff]
        %v298 = vld [vmem:[%s226 + $0xa0] sm:$0xff]
        %v299 = vld [vmem:[%s226 + $0xa8] sm:$0xff]
        %v300 = vld [vmem:[%s226 + $0xb0] sm:$0xff]
        %v301 = vld [vmem:[%s226 + $0xb8] sm:$0xff]
        %v302 = vld [vmem:[%s226 + $0xc0] sm:$0xff]
        %v303 = vld [vmem:[%s226 + $0xc8] sm:$0xff]
        %v304 = vld [vmem:[%s226 + $0xd0] sm:$0xff]
        %v305 = vld [vmem:[%s226 + $0xd8] sm:$0xff]
        %v306 = vld [vmem:[%s226 + $0xe0] sm:$0xff]
        %v307 = vld [vmem:[%s226 + $0xe8] sm:$0xff]
        %v308 = vld [vmem:[%s226 + $0xf0] sm:$0xff]
        %v309 = vld [vmem:[%s226 + $0xf8] sm:$0xff]
        %v312 = vunpack.c.l.b16 %v276
        %v313 = vunpack.c.h.b16 %v276
        %v314 = vunpack.c.l.b16 %v277
        %v315 = vunpack.c.h.b16 %v277
        %v316 = vpack.c.b16 %v314, %v312
        %v317 = vpack.c.b16 %v315, %v313
        %v352 = vunpack.c.l.b16 %v278
        %v353 = vunpack.c.h.b16 %v278
        %v354 = vunpack.c.l.b16 %v279
        %v355 = vunpack.c.h.b16 %v279
        %v356 = vunpack.c.l.b16 %v280
        %v357 = vunpack.c.h.b16 %v280
        %v358 = vunpack.c.l.b16 %v281
        %v359 = vunpack.c.h.b16 %v281
        %v360 = vunpack.c.l.b16 %v282
        %v361 = vunpack.c.h.b16 %v282
        %v362 = vunpack.c.l.b16 %v283
        %v363 = vunpack.c.h.b16 %v283
        %v364 = vunpack.c.l.b16 %v284
        %v365 = vunpack.c.h.b16 %v284
        %v366 = vunpack.c.l.b16 %v285
        %v367 = vunpack.c.h.b16 %v285
        %v368 = vunpack.c.l.b16 %v286
        %v369 = vunpack.c.h.b16 %v286
        %v370 = vunpack.c.l.b16 %v287
        %v371 = vunpack.c.h.b16 %v287
        %v372 = vunpack.c.l.b16 %v288
        %v373 = vunpack.c.h.b16 %v288
        %v374 = vunpack.c.l.b16 %v289
        %v375 = vunpack.c.h.b16 %v289
        %v376 = vunpack.c.l.b16 %v290
        %v377 = vunpack.c.h.b16 %v290
        %v378 = vunpack.c.l.b16 %v291
        %v379 = vunpack.c.h.b16 %v291
        %v380 = vunpack.c.l.b16 %v292
        %v381 = vunpack.c.h.b16 %v292
        %v382 = vunpack.c.l.b16 %v293
        %v383 = vunpack.c.h.b16 %v293
        %v384 = vunpack.c.l.b16 %v294
        %v385 = vunpack.c.h.b16 %v294
        %v386 = vunpack.c.l.b16 %v295
        %v387 = vunpack.c.h.b16 %v295
        %v388 = vunpack.c.l.b16 %v296
        %v389 = vunpack.c.h.b16 %v296
        %v390 = vunpack.c.l.b16 %v297
        %v391 = vunpack.c.h.b16 %v297
        %v392 = vunpack.c.l.b16 %v298
        %v393 = vunpack.c.h.b16 %v298
        %v394 = vunpack.c.l.b16 %v299
        %v395 = vunpack.c.h.b16 %v299
        %v396 = vunpack.c.l.b16 %v300
        %v397 = vunpack.c.h.b16 %v300
        %v398 = vunpack.c.l.b16 %v301
        %v399 = vunpack.c.h.b16 %v301
        %v400 = vunpack.c.l.b16 %v302
        %v401 = vunpack.c.h.b16 %v302
        %v402 = vunpack.c.l.b16 %v303
        %v403 = vunpack.c.h.b16 %v303
        %v404 = vunpack.c.l.b16 %v304
        %v405 = vunpack.c.h.b16 %v304
        %v406 = vunpack.c.l.b16 %v305
        %v407 = vunpack.c.h.b16 %v305
        %v408 = vunpack.c.l.b16 %v306
        %v409 = vunpack.c.h.b16 %v306
        %v410 = vunpack.c.l.b16 %v307
        %v411 = vunpack.c.h.b16 %v307
        %v412 = vunpack.c.l.b16 %v308
        %v413 = vunpack.c.h.b16 %v308
        %v414 = vunpack.c.l.b16 %v309
        %v415 = vunpack.c.h.b16 %v309
        %v416 = vpack.c.b16 %v354, %v352
        %v417 = vpack.c.b16 %v355, %v353
        %v418 = vpack.c.b16 %v358, %v356
        %v419 = vpack.c.b16 %v359, %v357
        %v420 = vpack.c.b16 %v362, %v360
        %v421 = vpack.c.b16 %v363, %v361
        %v422 = vpack.c.b16 %v366, %v364
        %v423 = vpack.c.b16 %v367, %v365
        %v424 = vpack.c.b16 %v370, %v368
        %v425 = vpack.c.b16 %v371, %v369
        %v426 = vpack.c.b16 %v374, %v372
        %v427 = vpack.c.b16 %v375, %v373
        %v428 = vpack.c.b16 %v378, %v376
        %v429 = vpack.c.b16 %v379, %v377
        %v430 = vpack.c.b16 %v382, %v380
        %v431 = vpack.c.b16 %v383, %v381
        %v432 = vpack.c.b16 %v386, %v384
        %v433 = vpack.c.b16 %v387, %v385
        %v434 = vpack.c.b16 %v390, %v388
        %v435 = vpack.c.b16 %v391, %v389
        %v436 = vpack.c.b16 %v394, %v392
        %v437 = vpack.c.b16 %v395, %v393
        %v438 = vpack.c.b16 %v398, %v396
        %v439 = vpack.c.b16 %v399, %v397
        %v440 = vpack.c.b16 %v402, %v400
        %v441 = vpack.c.b16 %v403, %v401
        %v442 = vpack.c.b16 %v406, %v404
        %v443 = vpack.c.b16 %v407, %v405
        %v444 = vpack.c.b16 %v410, %v408
        %v445 = vpack.c.b16 %v411, %v409
        %v446 = vpack.c.b16 %v414, %v412
        %v447 = vpack.c.b16 %v415, %v413
        %480 = vmatprep.subr.bf16.mxu0 %v417
        %481 = vmatpush1.bf16.msra.mxu0 %v416
        %482 = vmatprep.subr.bf16.mxu0 %v419
        %483 = vmatpush1.bf16.msra.mxu0 %v418
        %484 = vmatprep.subr.bf16.mxu0 %v421
        %485 = vmatpush1.bf16.msra.mxu0 %v420
        %486 = vmatprep.subr.bf16.mxu0 %v423
        %487 = vmatpush1.bf16.msra.mxu0 %v422
        %488 = vmatprep.subr.bf16.mxu0 %v425
        %489 = vmatpush1.bf16.msra.mxu0 %v424
        %490 = vmatprep.subr.bf16.mxu0 %v427
        %491 = vmatpush1.bf16.msra.mxu0 %v426
        %492 = vmatprep.subr.bf16.mxu0 %v429
        %493 = vmatpush1.bf16.msra.mxu0 %v428
        %494 = vmatprep.subr.bf16.mxu0 %v431
        %495 = vmatpush1.bf16.msra.mxu0 %v430
        %496 = vmatprep.subr.bf16.mxu0 %v433
        %497 = vmatpush1.bf16.msra.mxu0 %v432
        %498 = vmatprep.subr.bf16.mxu0 %v435
        %499 = vmatpush1.bf16.msra.mxu0 %v434
        %500 = vmatprep.subr.bf16.mxu0 %v437
        %501 = vmatpush1.bf16.msra.mxu0 %v436
        %502 = vmatprep.subr.bf16.mxu0 %v439
        %503 = vmatpush1.bf16.msra.mxu0 %v438
        %504 = vmatprep.subr.bf16.mxu0 %v441
        %505 = vmatpush1.bf16.msra.mxu0 %v440
        %506 = vmatprep.subr.bf16.mxu0 %v443
        %507 = vmatpush1.bf16.msra.mxu0 %v442
        %508 = vmatprep.subr.bf16.mxu0 %v445
        %509 = vmatpush1.bf16.msra.mxu0 %v444
        %510 = vmatprep.subr.bf16.mxu0 %v447
        %511 = vmatpush1.bf16.msra.mxu0 %v446
        %512 = vmatprep.mubr.bf16.mxu0 %v317
        %513 = vmatmul.mubr.bf16.gmra.mrb[0].mxu0 %v316
        %v514 = vpop.f32.mrb[0].mxu0
        %v515 = vadd.f32 0.0, %v514
        %v516 = vpop.f32.mrb[0].mxu0
        %v517 = vadd.f32 0.0, %v516
        %v518 = vpop.f32.mrb[0].mxu0
        %v519 = vadd.f32 0.0, %v518
        %v520 = vpop.f32.mrb[0].mxu0
        %v521 = vadd.f32 0.0, %v520
        %522 = vdwg.mxu0
        %v523 = vxor.u32 %v515, 2147483648
        %v524 = vxor.u32 %v519, 2147483648
        %v525 = vmul.f32 %v523, 1.442695
        %v526 = vpow.pop %v525
        %v527 = vmul.f32 %v524, 1.442695
        %v528 = vpow.pop %v527
        %v529 = vadd.f32 %v526, 1.0
        %v530 = vadd.f32 %v528, 1.0
        %v531 = vrcp.pop %v529
        %v532 = vmul.f32 1.0, %v531
        %v533 = vrcp.pop %v530
        %v534 = vmul.f32 1.0, %v533
        %v535 = vmul.f32 %v515, %v532
        %v536 = vmul.f32 %v519, %v534
        %v537 = vmul.f32 %v535, %v517
        %v538 = vmul.f32 %v536, %v521
        %v539 = vpack.c.bf16 %v538, %v537
        %v540 = vld [vmem:[%s235] sm:$0xff]
        %v541 = vld [vmem:[%s235 + $0x8] sm:$0xff]
        %v542 = vld [vmem:[%s235 + $0x10] sm:$0xff]
        %v543 = vld [vmem:[%s235 + $0x18] sm:$0xff]
        %v544 = vld [vmem:[%s235 + $0x20] sm:$0xff]
        %v545 = vld [vmem:[%s235 + $0x28] sm:$0xff]
        %v546 = vld [vmem:[%s235 + $0x30] sm:$0xff]
        %v547 = vld [vmem:[%s235 + $0x38] sm:$0xff]
        %v548 = vld [vmem:[%s235 + $0x40] sm:$0xff]
        %v549 = vld [vmem:[%s235 + $0x48] sm:$0xff]
        %v550 = vld [vmem:[%s235 + $0x50] sm:$0xff]
        %v551 = vld [vmem:[%s235 + $0x58] sm:$0xff]
        %v552 = vld [vmem:[%s235 + $0x60] sm:$0xff]
        %v553 = vld [vmem:[%s235 + $0x68] sm:$0xff]
        %v554 = vld [vmem:[%s235 + $0x70] sm:$0xff]
        %v555 = vld [vmem:[%s235 + $0x78] sm:$0xff]
        %v572 = vunpack.c.l.b16 %v540
        %v573 = vunpack.c.h.b16 %v540
        %v574 = vunpack.c.l.b16 %v541
        %v575 = vunpack.c.h.b16 %v541
        %v576 = vunpack.c.l.b16 %v542
        %v577 = vunpack.c.h.b16 %v542
        %v578 = vunpack.c.l.b16 %v543
        %v579 = vunpack.c.h.b16 %v543
        %v580 = vunpack.c.l.b16 %v544
        %v581 = vunpack.c.h.b16 %v544
        %v582 = vunpack.c.l.b16 %v545
        %v583 = vunpack.c.h.b16 %v545
        %v584 = vunpack.c.l.b16 %v546
        %v585 = vunpack.c.h.b16 %v546
        %v586 = vunpack.c.l.b16 %v547
        %v587 = vunpack.c.h.b16 %v547
        %v588 = vunpack.c.l.b16 %v548
        %v589 = vunpack.c.h.b16 %v548
        %v590 = vunpack.c.l.b16 %v549
        %v591 = vunpack.c.h.b16 %v549
        %v592 = vunpack.c.l.b16 %v550
        %v593 = vunpack.c.h.b16 %v550
        %v594 = vunpack.c.l.b16 %v551
        %v595 = vunpack.c.h.b16 %v551
        %v596 = vunpack.c.l.b16 %v552
        %v597 = vunpack.c.h.b16 %v552
        %v598 = vunpack.c.l.b16 %v553
        %v599 = vunpack.c.h.b16 %v553
        %v600 = vunpack.c.l.b16 %v554
        %v601 = vunpack.c.h.b16 %v554
        %v602 = vunpack.c.l.b16 %v555
        %v603 = vunpack.c.h.b16 %v555
        %v604 = vpack.c.b16 %v574, %v572
        %v605 = vpack.c.b16 %v575, %v573
        %v606 = vpack.c.b16 %v578, %v576
        %v607 = vpack.c.b16 %v579, %v577
        %v608 = vpack.c.b16 %v582, %v580
        %v609 = vpack.c.b16 %v583, %v581
        %v610 = vpack.c.b16 %v586, %v584
        %v611 = vpack.c.b16 %v587, %v585
        %v612 = vpack.c.b16 %v590, %v588
        %v613 = vpack.c.b16 %v591, %v589
        %v614 = vpack.c.b16 %v594, %v592
        %v615 = vpack.c.b16 %v595, %v593
        %v616 = vpack.c.b16 %v598, %v596
        %v617 = vpack.c.b16 %v599, %v597
        %v618 = vpack.c.b16 %v602, %v600
        %v619 = vpack.c.b16 %v603, %v601
        %636 = vmatprep.subr.bf16.mxu0 %v605
        %637 = vmatpush1.bf16.msra.mxu0 %v604
        %638 = vmatprep.subr.bf16.mxu0 %v607
        %639 = vmatpush1.bf16.msra.mxu0 %v606
        %640 = vmatprep.subr.bf16.mxu0 %v609
        %641 = vmatpush1.bf16.msra.mxu0 %v608
        %642 = vmatprep.subr.bf16.mxu0 %v611
        %643 = vmatpush1.bf16.msra.mxu0 %v610
        %644 = vmatprep.subr.bf16.mxu0 %v613
        %645 = vmatpush1.bf16.msra.mxu0 %v612
        %646 = vmatprep.subr.bf16.mxu0 %v615
        %647 = vmatpush1.bf16.msra.mxu0 %v614
        %648 = vmatprep.subr.bf16.mxu0 %v617
        %649 = vmatpush1.bf16.msra.mxu0 %v616
        %650 = vmatprep.subr.bf16.mxu0 %v619
        %651 = vmatpush1.bf16.msra.mxu0 %v618
        %652 = vmatprep.subr.bf16.mxu0 0
        %653 = vmatpush1.bf16.msra.mxu0 0
        %654 = vmatprep.subr.bf16.mxu0 0
        %655 = vmatpush1.bf16.msra.mxu0 0
        %656 = vmatprep.subr.bf16.mxu0 0
        %657 = vmatpush1.bf16.msra.mxu0 0
        %658 = vmatprep.subr.bf16.mxu0 0
        %659 = vmatpush1.bf16.msra.mxu0 0
        %660 = vmatprep.subr.bf16.mxu0 0
        %661 = vmatpush1.bf16.msra.mxu0 0
        %662 = vmatprep.subr.bf16.mxu0 0
        %663 = vmatpush1.bf16.msra.mxu0 0
        %664 = vmatprep.subr.bf16.mxu0 0
        %665 = vmatpush1.bf16.msra.mxu0 0
        %666 = vmatprep.subr.bf16.mxu0 0
        %667 = vmatpush1.bf16.msra.mxu0 0
        %668 = vmatprep.mubr.bf16.mxu0 0
        %669 = vmatmul.mubr.bf16.gmra.mrb[0].mxu0 %v539
        %v670 = vpop.f32.mrb[0].mxu0
        %v671 = vadd.f32 0.0, %v670
        %v672 = vpop.f32.mrb[0].mxu0
        %v673 = vadd.f32 0.0, %v672
        %v674 = vpop.f32.mrb[0].mxu0
        %v675 = vadd.f32 0.0, %v674
        %v676 = vpop.f32.mrb[0].mxu0
        %v677 = vadd.f32 0.0, %v676
        %678 = vdwg.mxu0
        %p679 = scmp.eq.s32.totalorder %s26, 3
        %p680 = scmp.ne.s32.totalorder %s26, 3
        // Predicated region
        $region49: #{tpu_custom_call.1} parent=31 // pred_check
          %p681 = pneg %p680
        $region50: #{tpu_custom_call.1} parent=31 // pred_check_branch
          %683 = sbr.rel (%p681) target = $region52
        $region51: #{tpu_custom_call.1} parent=31 // pred_region
          %v684 = vld [vmem:[#allocation2] sm:$0xff]
          %v685 = vld [vmem:[#allocation2 + $0x8] sm:$0xff]
          %v686 = vld [vmem:[#allocation2 + $0x10] sm:$0xff]
          %v687 = vld [vmem:[#allocation2 + $0x18] sm:$0xff]
          %v688 = vadd.f32 %v684, %v671
          %v689 = vadd.f32 %v685, %v673
          %v690 = vadd.f32 %v686, %v675
          %v691 = vadd.f32 %v687, %v677
          %692 = vst [vmem:[#allocation2] sm:$0xff] %v688
          %693 = vst [vmem:[#allocation2 + $0x8] sm:$0xff] %v689
          %694 = vst [vmem:[#allocation2 + $0x10] sm:$0xff] %v690
          %695 = vst [vmem:[#allocation2 + $0x18] sm:$0xff] %v691
        $region52: #{tpu_custom_call.1} parent=31 // pred_fallthru
          _
        // Predicated region
        $region53: #{tpu_custom_call.1} parent=31 // pred_check
          %p696 = pneg %p679
        $region54: #{tpu_custom_call.1} parent=31 // pred_check_branch
          %698 = sbr.rel (%p696) target = $region56
        $region55: #{tpu_custom_call.1} parent=31 // pred_region
          %v699 = vld [vmem:[#allocation2] sm:$0xff]
          %v700 = vld [vmem:[#allocation2 + $0x8] sm:$0xff]
          %v701 = vld [vmem:[#allocation2 + $0x10] sm:$0xff]
          %v702 = vld [vmem:[#allocation2 + $0x18] sm:$0xff]
          %v703 = vadd.f32 %v699, %v671
          %v704 = vadd.f32 %v700, %v673
          %v705 = vadd.f32 %v701, %v675
          %v706 = vadd.f32 %v702, %v677
          %v707 = vpack.c.bf16 %v705, %v703
          %v708 = vpack.c.bf16 %v706, %v704
          %v711 = vunpack.c.l.b16 %v707
          %v712 = vunpack.c.l.b16 %v708
          %v713 = vunpack.c.h.b16 %v707
          %v714 = vunpack.c.h.b16 %v708
          %v715 = vpack.c.b16 %v712, %v711
          %v716 = vpack.c.b16 %v714, %v713
          %719 = vst [vmem:[%s262] sm:$0xff] %v715
          %720 = vst [vmem:[%s262 + $0x8] sm:$0xff] %v716
        $region56: #{tpu_custom_call.1} parent=31 // pred_fallthru
          _
        %s721 = sand.u32 %s119, 1
        %s722 = scalar_lea.sflag [#allocation5], %s721
        %s723 = sand.u32 %s119, 1
        %s724 = smul.addr %s723, 16
        %s725 = scalar_lea.vmem [#allocation9], %s724
        // Predicated region
        $region57: #{tpu_custom_call.1} parent=31 // pred_check
          %p726 = pneg %p129
        $region58: #{tpu_custom_call.1} parent=31 // pred_check_branch
          %728 = sbr.rel (%p726) target = $region60
        $region59: #{tpu_custom_call.1} parent=31 // pred_region
          %s729 = smul.u32 2, %s25
          %s731 = ssub.s32 256, 256
          %732 = vsyncadd %s722, %s731
          %s733 = smul.addr %s729, 2
          %s734 = smul.addr %s733, 64
          %s735 = scalar_lea.hbm %s3, %s734
          %s736 = sshll.u32 %s725, 4
          %s737 = int_to_ptr.vmem [resolvable:$true] %s736
          %742 = dma.vmem_to_hbm [thread:$0]  %s737, 256, %s735, %s722, 128, 128, 8
        $region60: #{tpu_custom_call.1} parent=31 // pred_fallthru
          _
      $region32: #{tpu_custom_call.1} parent=5 // pred_fallthru
        _
      %p743 = scmp.le.s32.totalorder 2, %s16
      // Predicated region
      $region61: #{tpu_custom_call.1} parent=5 // pred_check
        %p744 = pneg %p743
      $region62: #{tpu_custom_call.1} parent=5 // pred_check_branch
        %746 = sbr.rel (%p744) target = $region64
      $region63: #{tpu_custom_call.1} parent=5 // pred_region
        %s747 = ssub.s32 %s16, 2
        // Predicated region
        $region65: #{tpu_custom_call.1} parent=63 // pred_check
          %p748 = pneg %p135
        $region66: #{tpu_custom_call.1} parent=63 // pred_check_branch
          %750 = sbr.rel (%p748) target = $region68
        $region67: #{tpu_custom_call.1} parent=63 // pred_region
          %s751 = sand.u32 %s120, 1
          %s752 = scalar_lea.sflag [#allocation5], %s751
          %s753 = sand.u32 %s120, 1
          %s754 = smul.addr %s753, 16
          %s755 = scalar_lea.vmem [#allocation9], %s754
          %756 = dma.done %s752, 256
        $region68: #{tpu_custom_call.1} parent=63 // pred_fallthru
          _
      $region64: #{tpu_custom_call.1} parent=5 // pred_fallthru
        _
    $region6: #{tpu_custom_call.1} parent=1 // loop_footer
      %s20 = sadd.s32 1, %s16
    $region7: #{tpu_custom_call.1} parent=1 // loop_footer_branch
      %15 = sbr.rel target = $region3
    $region8: #{tpu_custom_call.1} parent=1 // loop_exit
      _
    %757 = vsyncpa [#allocation4], 1
    %s758 = scalar_lea.sflag [#allocation4], 1
    %759 = vsyncpa %s758, 1
    %760 = vsyncpa [#allocation7], 1
    %s761 = scalar_lea.sflag [#allocation7], 1
    %762 = vsyncpa %s761, 1
    %763 = vsyncpa [#allocation5], 1
    %s764 = scalar_lea.sflag [#allocation5], 1
    %765 = vsyncpa %s764, 1

// kernel: tpu_custom_call.1
$region0: #{tpu_custom_call.1}
  #allocation0 [shape = 'u32[]', space=smem, size = 0x4, offset = 0x4, fixed_abs, tag = 'smem constant byte address 0x4 - core index']
  #allocation1 [shape = 'u32[144,128]{1,0:T(1,128)}', space=vmem, size = 0x12000, scoped, tag = 'internal scratch']
  #allocation2 [shape = 'f32[16,256]{1,0:T(8,128)}', space=vmem, size = 0x4000, scoped, tag = 'scratch operand']
  %s0 = inlined_call_operand.hbm [shape: bf16[48,256], index: 0, kind: input, shape index: {}]
  %s1 = inlined_call_operand.hbm [shape: bf16[256,1024], index: 1, kind: input, shape index: {}]
  %s2 = inlined_call_operand.hbm [shape: bf16[512,256], index: 2, kind: input, shape index: {}]
  %s3 = inlined_call_operand.hbm [shape: bf16[48,256], index: 3, kind: output, shape index: {}]
  %s4 = sld [smem:[#allocation0]]
  $region69: #{tpu_custom_call.1} parent=0
    _
  %s6 = ssub.s32 1, %s4
  %s7 = scalar_select 0, %s6, %s4
  $region1: #{tpu_custom_call.1} parent=0
    #allocation3 [shape = 'u8[16384]{0}', space=vmem, size = 0x4000, scoped, tag = 'input window, operand 0']
    #allocation4 [shape = 's32[2]{0}', space=sflag, size = 0x8, scoped, tag = 'scoped memory for tpu_custom_call.1']
    #allocation5 [shape = 's32[2]{0}', space=sflag, size = 0x8, scoped, tag = 'scoped memory for tpu_custom_call.1']
    #allocation6 [shape = 'u8[262144]{0}', space=vmem, size = 0x40000, scoped, tag = 'input window, operand 1']
    #allocation7 [shape = 's32[2]{0}', space=sflag, size = 0x8, scoped, tag = 'scoped memory for tpu_custom_call.1']
    #allocation8 [shape = 'u8[131072]{0}', space=vmem, size = 0x20000, scoped, tag = 'input window, operand 2']
    #allocation9 [shape = 'u8[16384]{0}', space=vmem, size = 0x4000, scoped, tag = 'output window, operand 0']
    %8 = vsyncpa [#allocation4], 0
    %s9 = scalar_lea.sflag [#allocation4], 1
    %10 = vsyncpa %s9, 0
    %11 = vsyncpa [#allocation7], 0
    %s12 = scalar_lea.sflag [#allocation7], 1
    %13 = vsyncpa %s12, 0
    %14 = vsyncpa [#allocation5], 0
    %s15 = scalar_lea.sflag [#allocation5], 1
    %16 = vsyncpa %s15, 0
    loop: start=0, step=1, limit=14
    $region2: #{tpu_custom_call.1} parent=1 // loop_pre_header
      _
    $region3: #{tpu_custom_call.1} parent=1 // loop_header
      %s18 = sphi 0, %s22
      %p19 = scmp.ge.s32.totalorder %s18, 14
      %s25 = sphi 0, %s37
      %s26 = sphi 0, %s33
      %s27 = sphi 0, %s25
      %s28 = sphi 0, %s26
      %s29 = sphi 0, %s27
      %s30 = sphi 0, %s28
      %s40 = sphi 0, %s42
      %s43 = sphi 0, %s40
      %s44 = sphi 0, %s43
      %s60 = sphi 0, %s44
      %s66 = sphi 0, %s68
      %s69 = sphi 0, %s66
      %s70 = sphi 0, %s69
      %s86 = sphi 0, %s70
      %s92 = sphi 0, %s94
      %s95 = sphi 0, %s92
      %s96 = sphi 0, %s95
      %s112 = sphi 0, %s96
      %s118 = sphi 0, %s120
      %s121 = sphi 0, %s118
      %s122 = sphi 0, %s121
      %s138 = sphi 0, %s122
    $region4: #{tpu_custom_call.1} parent=1 // loop_header_branch
      %21 = sbr.rel (%p19) target = $region8
    $region5: #{tpu_custom_call.1} parent=1 // loop_body
      %s23 = ssub.s32 %s18, 1
      %s24 = ssub.s32 %s18, 2
      %s31 = sadd.s32 1, %s26
      %p32 = scmp.ge.s32.totalorder %s31, 4
      %s33 = scalar_select %p32, 0, %s31
      %s34 = sadd.s32 1, %s25
      %s35 = scalar_select %p32, %s34, %s25
      %p36 = scmp.ge.s32.totalorder %s35, 3
      %s37 = scalar_select %p36, 0, %s35
      %s38 = ssub.s32 %s25, %s37
      %p39 = scmp.eq.s32.totalorder %s38, 0
      %s41 = sadd.s32 %s40, 1
      %s42 = scalar_select %p39, %s40, %s41
      %p45 = pneg %p39
      %p46 = scmp.eq.s32.totalorder %s18, 11
      %p47 = por %p45, %p46
      %p48 = scmp.ne.s32.totalorder %s40, %s43
      %p49 = scmp.eq.s32.totalorder %s18, 0
      %p50 = por %p48, %p49
      %p51 = scmp.ne.s32.totalorder %s40, %s43
      %p52 = scmp.eq.s32.totalorder %s23, 11
      %p53 = por %p51, %p52
      %p54 = scmp.ne.s32.totalorder %s43, %s44
      %p55 = scmp.eq.s32.totalorder %s23, 0
      %p56 = por %p54, %p55
      %p57 = scmp.ne.s32.totalorder %s43, %s44
      %p58 = scmp.eq.s32.totalorder %s24, 11
      %p59 = por %p57, %p58
      %p61 = scmp.ne.s32.totalorder %s44, %s60
      %p62 = scmp.eq.s32.totalorder %s24, 0
      %p63 = por %p61, %p62
      %s64 = ssub.s32 %s26, %s33
      %p65 = scmp.eq.s32.totalorder %s64, 0
      %s67 = sadd.s32 %s66, 1
      %s68 = scalar_select %p65, %s66, %s67
      %p71 = pneg %p65
      %p72 = scmp.eq.s32.totalorder %s18, 11
      %p73 = por %p71, %p72
      %p74 = scmp.ne.s32.totalorder %s66, %s69
      %p75 = scmp.eq.s32.totalorder %s18, 0
      %p76 = por %p74, %p75
      %p77 = scmp.ne.s32.totalorder %s66, %s69
      %p78 = scmp.eq.s32.totalorder %s23, 11
      %p79 = por %p77, %p78
      %p80 = scmp.ne.s32.totalorder %s69, %s70
      %p81 = scmp.eq.s32.totalorder %s23, 0
      %p82 = por %p80, %p81
      %p83 = scmp.ne.s32.totalorder %s69, %s70
      %p84 = scmp.eq.s32.totalorder %s24, 11
      %p85 = por %p83, %p84
      %p87 = scmp.ne.s32.totalorder %s70, %s86
      %p88 = scmp.eq.s32.totalorder %s24, 0
      %p89 = por %p87, %p88
      %s90 = ssub.s32 %s26, %s33
      %p91 = scmp.eq.s32.totalorder %s90, 0
      %s93 = sadd.s32 %s92, 1
      %s94 = scalar_select %p91, %s92, %s93
      %p97 = pneg %p91
      %p98 = scmp.eq.s32.totalorder %s18, 11
      %p99 = por %p97, %p98
      %p100 = scmp.ne.s32.totalorder %s92, %s95
      %p101 = scmp.eq.s32.totalorder %s18, 0
      %p102 = por %p100, %p101
      %p103 = scmp.ne.s32.totalorder %s92, %s95
      %p104 = scmp.eq.s32.totalorder %s23, 11
      %p105 = por %p103, %p104
      %p106 = scmp.ne.s32.totalorder %s95, %s96
      %p107 = scmp.eq.s32.totalorder %s23, 0
      %p108 = por %p106, %p107
      %p109 = scmp.ne.s32.totalorder %s95, %s96
      %p110 = scmp.eq.s32.totalorder %s24, 11
      %p111 = por %p109, %p110
      %p113 = scmp.ne.s32.totalorder %s96, %s112
      %p114 = scmp.eq.s32.totalorder %s24, 0
      %p115 = por %p113, %p114
      %s116 = ssub.s32 %s25, %s37
      %p117 = scmp.eq.s32.totalorder %s116, 0
      %s119 = sadd.s32 %s118, 1
      %s120 = scalar_select %p117, %s118, %s119
      %p123 = pneg %p117
      %p124 = scmp.eq.s32.totalorder %s18, 11
      %p125 = por %p123, %p124
      %p126 = scmp.ne.s32.totalorder %s118, %s121
      %p127 = scmp.eq.s32.totalorder %s18, 0
      %p128 = por %p126, %p127
      %p129 = scmp.ne.s32.totalorder %s118, %s121
      %p130 = scmp.eq.s32.totalorder %s23, 11
      %p131 = por %p129, %p130
      %p132 = scmp.ne.s32.totalorder %s121, %s122
      %p133 = scmp.eq.s32.totalorder %s23, 0
      %p134 = por %p132, %p133
      %p135 = scmp.ne.s32.totalorder %s121, %s122
      %p136 = scmp.eq.s32.totalorder %s24, 11
      %p137 = por %p135, %p136
      %p139 = scmp.ne.s32.totalorder %s122, %s138
      %p140 = scmp.eq.s32.totalorder %s24, 0
      %p141 = por %p139, %p140
      %p142 = scmp.le.s32.totalorder 1, %s18
      %p143 = scmp.lt.s32.totalorder %s18, 13
      %p144 = pnand %p142, %p143
      %p145 = pneg %p144
      // Predicated region
      $region9: #{tpu_custom_call.1} parent=5 // pred_check
        _
      $region10: #{tpu_custom_call.1} parent=5 // pred_check_branch
        %147 = sbr.rel (%p144) target = $region12
      $region11: #{tpu_custom_call.1} parent=5 // pred_region
        %s148 = ssub.s32 %s18, 1
      $region12: #{tpu_custom_call.1} parent=5 // pred_fallthru
        _
      %p149 = scmp.lt.s32.totalorder %s18, 12
      // Predicated region
      $region13: #{tpu_custom_call.1} parent=5 // pred_check
        %p150 = pneg %p149
      $region14: #{tpu_custom_call.1} parent=5 // pred_check_branch
        %152 = sbr.rel (%p150) target = $region16
      $region15: #{tpu_custom_call.1} parent=5 // pred_region
        // Predicated region
        $region17: #{tpu_custom_call.1} parent=15 // pred_check
          %p153 = pneg %p50
        $region18: #{tpu_custom_call.1} parent=15 // pred_check_branch
          %155 = sbr.rel (%p153) target = $region20
        $region19: #{tpu_custom_call.1} parent=15 // pred_region
          %s156 = sand.u32 %s40, 1
          %s157 = scalar_lea.sflag [#allocation4], %s156
          %s158 = sand.u32 %s40, 1
          %s159 = smul.addr %s158, 16
          %s160 = scalar_lea.vmem [#allocation3], %s159
          %s161 = smul.u32 2, %s25
          %s163 = ssub.s32 256, 256
          %164 = vsyncadd %s157, %s163
          %s165 = smul.addr %s161, 2
          %s166 = smul.addr %s165, 64
          %s167 = scalar_lea.hbm %s0, %s166
          %s168 = sshll.u32 %s160, 4
          %s169 = int_to_ptr.vmem [resolvable:$true] %s168
          %174 = dma.hbm_to_vmem [thread:$0]  %s167, 256, %s169, %s157, 128, 128, 8
        $region20: #{tpu_custom_call.1} parent=15 // pred_fallthru
          _
        // Predicated region
        $region21: #{tpu_custom_call.1} parent=15 // pred_check
          %p175 = pneg %p76
        $region22: #{tpu_custom_call.1} parent=15 // pred_check_branch
          %177 = sbr.rel (%p175) target = $region24
        $region23: #{tpu_custom_call.1} parent=15 // pred_region
          %s178 = sand.u32 %s18, 1
          %s179 = scalar_lea.sflag [#allocation7], %s178
          %s180 = sand.u32 %s66, 1
          %s181 = smul.addr %s180, 256
          %s182 = scalar_lea.vmem [#allocation6], %s181
          %s183 = smul.u32 2, %s26
          %s185 = ssub.s32 4096, 4096
          %186 = vsyncadd %s179, %s185
          %s187 = smul.addr %s183, 64
          %s188 = scalar_lea.hbm %s1, %s187
          %s189 = sshll.u32 %s182, 4
          %s190 = int_to_ptr.vmem [resolvable:$true] %s189
          %195 = dma.hbm_to_vmem [thread:$0]  %s188, 4096, %s190, %s179, 512, 128, 8
        $region24: #{tpu_custom_call.1} parent=15 // pred_fallthru
          _
        // Predicated region
        $region25: #{tpu_custom_call.1} parent=15 // pred_check
          %p196 = pneg %p102
        $region26: #{tpu_custom_call.1} parent=15 // pred_check_branch
          %198 = sbr.rel (%p196) target = $region28
        $region27: #{tpu_custom_call.1} parent=15 // pred_region
          %s199 = sand.u32 %s18, 1
          %s200 = scalar_lea.sflag [#allocation7], %s199
          %s201 = sand.u32 %s92, 1
          %s202 = smul.addr %s201, 128
          %s203 = scalar_lea.vmem [#allocation8], %s202
          %s204 = smul.u32 16, %s26
          %s206 = ssub.s32 2048, 2048
          %207 = vsyncadd %s200, %s206
          %s208 = smul.addr %s204, 2
          %s209 = smul.addr %s208, 64
          %s210 = scalar_lea.hbm %s2, %s209
          %s211 = sshll.u32 %s203, 4
          %s212 = int_to_ptr.vmem [resolvable:$true] %s211
          %217 = dma.hbm_to_vmem [thread:$0]  %s210, 2048, %s212, %s200, 128, 128, 8
        $region28: #{tpu_custom_call.1} parent=15 // pred_fallthru
          _
      $region16: #{tpu_custom_call.1} parent=5 // pred_fallthru
        _
      %p218 = scmp.le.s32.totalorder 1, %s18
      %p219 = scmp.lt.s32.totalorder %s18, 13
      %p220 = pnand %p218, %p219
      %p221 = pneg %p220
      // Predicated region
      $region29: #{tpu_custom_call.1} parent=5 // pred_check
        _
      $region30: #{tpu_custom_call.1} parent=5 // pred_check_branch
        %223 = sbr.rel (%p220) target = $region32
      $region31: #{tpu_custom_call.1} parent=5 // pred_region
        %s224 = ssub.s32 %s18, 1
        %s225 = sand.u32 %s43, 1
        %s226 = scalar_lea.sflag [#allocation4], %s225
        %s227 = sand.u32 %s43, 1
        %s228 = smul.addr %s227, 16
        %s229 = scalar_lea.vmem [#allocation3], %s228
        // Predicated region
        $region33: #{tpu_custom_call.1} parent=31 // pred_check
          %p230 = pneg %p56
        $region34: #{tpu_custom_call.1} parent=31 // pred_check_branch
          %232 = sbr.rel (%p230) target = $region36
        $region35: #{tpu_custom_call.1} parent=31 // pred_region
          %233 = dma.done %s226, 256
        $region36: #{tpu_custom_call.1} parent=31 // pred_fallthru
          _
        %s234 = sand.u32 %s23, 1
        %s235 = scalar_lea.sflag [#allocation7], %s234
        %s236 = sand.u32 %s69, 1
        %s237 = smul.addr %s236, 256
        %s238 = scalar_lea.vmem [#allocation6], %s237
        // Predicated region
        $region37: #{tpu_custom_call.1} parent=31 // pred_check
          %p239 = pneg %p82
        $region38: #{tpu_custom_call.1} parent=31 // pred_check_branch
          %241 = sbr.rel (%p239) target = $region40
        $region39: #{tpu_custom_call.1} parent=31 // pred_region
          %242 = dma.done %s235, 4096
        $region40: #{tpu_custom_call.1} parent=31 // pred_fallthru
          _
        %s243 = sand.u32 %s23, 1
        %s244 = scalar_lea.sflag [#allocation7], %s243
        %s245 = sand.u32 %s95, 1
        %s246 = smul.addr %s245, 128
        %s247 = scalar_lea.vmem [#allocation8], %s246
        // Predicated region
        $region41: #{tpu_custom_call.1} parent=31 // pred_check
          %p248 = pneg %p108
        $region42: #{tpu_custom_call.1} parent=31 // pred_check_branch
          %250 = sbr.rel (%p248) target = $region44
        $region43: #{tpu_custom_call.1} parent=31 // pred_region
          %251 = dma.done %s244, 2048
        $region44: #{tpu_custom_call.1} parent=31 // pred_fallthru
          _
        %s252 = sand.u32 %s43, 1
        %s253 = scalar_lea.sflag [#allocation4], %s252
        %s254 = sand.u32 %s43, 1
        %s255 = smul.addr %s254, 16
        %s256 = scalar_lea.vmem [#allocation3], %s255
        %p257 = pneg %p56
        %p258 = pneg %p53
        %s259 = sand.u32 %s23, 1
        %s260 = scalar_lea.sflag [#allocation7], %s259
        %s261 = sand.u32 %s69, 1
        %s262 = smul.addr %s261, 256
        %s263 = scalar_lea.vmem [#allocation6], %s262
        %p264 = pneg %p82
        %p265 = pneg %p79
        %s266 = sand.u32 %s23, 1
        %s267 = scalar_lea.sflag [#allocation7], %s266
        %s268 = sand.u32 %s95, 1
        %s269 = smul.addr %s268, 128
        %s270 = scalar_lea.vmem [#allocation8], %s269
        %p271 = pneg %p108
        %p272 = pneg %p105
        %p273 = pneg %p134
        %p274 = pneg %p131
        %s275 = sand.u32 %s121, 1
        %s276 = scalar_lea.sflag [#allocation5], %s275
        %s277 = sand.u32 %s121, 1
        %s278 = smul.addr %s277, 16
        %s279 = scalar_lea.vmem [#allocation9], %s278
        %s280 = smul.u32 2, %s27
        %s281 = smul.u32 2, %s28
        %s282 = smul.u32 16, %s28
        %s283 = smul.u32 2, %s27
        %p285 = scmp.eq.s32.totalorder %s28, 0
        // Predicated region
        $region45: #{tpu_custom_call.1} parent=31 // pred_check
          %p286 = pneg %p285
        $region46: #{tpu_custom_call.1} parent=31 // pred_check_branch
          %288 = sbr.rel (%p286) target = $region48
        $region47: #{tpu_custom_call.1} parent=31 // pred_region
          %289 = vst [vmem:[#allocation2] sm:$0xff] 0.0
          %290 = vst [vmem:[#allocation2 + $0x8] sm:$0xff] 0.0
          %291 = vst [vmem:[#allocation2 + $0x10] sm:$0xff] 0.0
          %292 = vst [vmem:[#allocation2 + $0x18] sm:$0xff] 0.0
        $region48: #{tpu_custom_call.1} parent=31 // pred_fallthru
          _
        %v293 = vld [vmem:[%s229] sm:$0xff]
        %v294 = vld [vmem:[%s229 + $0x8] sm:$0xff]
        %v295 = vld [vmem:[%s238] sm:$0xff]
        %v296 = vld [vmem:[%s238 + $0x8] sm:$0xff]
        %v297 = vld [vmem:[%s238 + $0x10] sm:$0xff]
        %v298 = vld [vmem:[%s238 + $0x18] sm:$0xff]
        %v299 = vld [vmem:[%s238 + $0x20] sm:$0xff]
        %v300 = vld [vmem:[%s238 + $0x28] sm:$0xff]
        %v301 = vld [vmem:[%s238 + $0x30] sm:$0xff]
        %v302 = vld [vmem:[%s238 + $0x38] sm:$0xff]
        %v303 = vld [vmem:[%s238 + $0x40] sm:$0xff]
        %v304 = vld [vmem:[%s238 + $0x48] sm:$0xff]
        %v305 = vld [vmem:[%s238 + $0x50] sm:$0xff]
        %v306 = vld [vmem:[%s238 + $0x58] sm:$0xff]
        %v307 = vld [vmem:[%s238 + $0x60] sm:$0xff]
        %v308 = vld [vmem:[%s238 + $0x68] sm:$0xff]
        %v309 = vld [vmem:[%s238 + $0x70] sm:$0xff]
        %v310 = vld [vmem:[%s238 + $0x78] sm:$0xff]
        %v311 = vld [vmem:[%s238 + $0x80] sm:$0xff]
        %v312 = vld [vmem:[%s238 + $0x88] sm:$0xff]
        %v313 = vld [vmem:[%s238 + $0x90] sm:$0xff]
        %v314 = vld [vmem:[%s238 + $0x98] sm:$0xff]
        %v315 = vld [vmem:[%s238 + $0xa0] sm:$0xff]
        %v316 = vld [vmem:[%s238 + $0xa8] sm:$0xff]
        %v317 = vld [vmem:[%s238 + $0xb0] sm:$0xff]
        %v318 = vld [vmem:[%s238 + $0xb8] sm:$0xff]
        %v319 = vld [vmem:[%s238 + $0xc0] sm:$0xff]
        %v320 = vld [vmem:[%s238 + $0xc8] sm:$0xff]
        %v321 = vld [vmem:[%s238 + $0xd0] sm:$0xff]
        %v322 = vld [vmem:[%s238 + $0xd8] sm:$0xff]
        %v323 = vld [vmem:[%s238 + $0xe0] sm:$0xff]
        %v324 = vld [vmem:[%s238 + $0xe8] sm:$0xff]
        %v325 = vld [vmem:[%s238 + $0xf0] sm:$0xff]
        %v326 = vld [vmem:[%s238 + $0xf8] sm:$0xff]
        %v329 = vunpack.c.l.b16 %v293
        %v330 = vunpack.c.h.b16 %v293
        %v331 = vunpack.c.l.b16 %v294
        %v332 = vunpack.c.h.b16 %v294
        %v333 = vpack.c.b16 %v331, %v329
        %v334 = vpack.c.b16 %v332, %v330
        %v369 = vunpack.c.l.b16 %v295
        %v370 = vunpack.c.h.b16 %v295
        %v371 = vunpack.c.l.b16 %v296
        %v372 = vunpack.c.h.b16 %v296
        %v373 = vunpack.c.l.b16 %v297
        %v374 = vunpack.c.h.b16 %v297
        %v375 = vunpack.c.l.b16 %v298
        %v376 = vunpack.c.h.b16 %v298
        %v377 = vunpack.c.l.b16 %v299
        %v378 = vunpack.c.h.b16 %v299
        %v379 = vunpack.c.l.b16 %v300
        %v380 = vunpack.c.h.b16 %v300
        %v381 = vunpack.c.l.b16 %v301
        %v382 = vunpack.c.h.b16 %v301
        %v383 = vunpack.c.l.b16 %v302
        %v384 = vunpack.c.h.b16 %v302
        %v385 = vunpack.c.l.b16 %v303
        %v386 = vunpack.c.h.b16 %v303
        %v387 = vunpack.c.l.b16 %v304
        %v388 = vunpack.c.h.b16 %v304
        %v389 = vunpack.c.l.b16 %v305
        %v390 = vunpack.c.h.b16 %v305
        %v391 = vunpack.c.l.b16 %v306
        %v392 = vunpack.c.h.b16 %v306
        %v393 = vunpack.c.l.b16 %v307
        %v394 = vunpack.c.h.b16 %v307
        %v395 = vunpack.c.l.b16 %v308
        %v396 = vunpack.c.h.b16 %v308
        %v397 = vunpack.c.l.b16 %v309
        %v398 = vunpack.c.h.b16 %v309
        %v399 = vunpack.c.l.b16 %v310
        %v400 = vunpack.c.h.b16 %v310
        %v401 = vunpack.c.l.b16 %v311
        %v402 = vunpack.c.h.b16 %v311
        %v403 = vunpack.c.l.b16 %v312
        %v404 = vunpack.c.h.b16 %v312
        %v405 = vunpack.c.l.b16 %v313
        %v406 = vunpack.c.h.b16 %v313
        %v407 = vunpack.c.l.b16 %v314
        %v408 = vunpack.c.h.b16 %v314
        %v409 = vunpack.c.l.b16 %v315
        %v410 = vunpack.c.h.b16 %v315
        %v411 = vunpack.c.l.b16 %v316
        %v412 = vunpack.c.h.b16 %v316
        %v413 = vunpack.c.l.b16 %v317
        %v414 = vunpack.c.h.b16 %v317
        %v415 = vunpack.c.l.b16 %v318
        %v416 = vunpack.c.h.b16 %v318
        %v417 = vunpack.c.l.b16 %v319
        %v418 = vunpack.c.h.b16 %v319
        %v419 = vunpack.c.l.b16 %v320
        %v420 = vunpack.c.h.b16 %v320
        %v421 = vunpack.c.l.b16 %v321
        %v422 = vunpack.c.h.b16 %v321
        %v423 = vunpack.c.l.b16 %v322
        %v424 = vunpack.c.h.b16 %v322
        %v425 = vunpack.c.l.b16 %v323
        %v426 = vunpack.c.h.b16 %v323
        %v427 = vunpack.c.l.b16 %v324
        %v428 = vunpack.c.h.b16 %v324
        %v429 = vunpack.c.l.b16 %v325
        %v430 = vunpack.c.h.b16 %v325
        %v431 = vunpack.c.l.b16 %v326
        %v432 = vunpack.c.h.b16 %v326
        %v433 = vpack.c.b16 %v371, %v369
        %v434 = vpack.c.b16 %v372, %v370
        %v435 = vpack.c.b16 %v375, %v373
        %v436 = vpack.c.b16 %v376, %v374
        %v437 = vpack.c.b16 %v379, %v377
        %v438 = vpack.c.b16 %v380, %v378
        %v439 = vpack.c.b16 %v383, %v381
        %v440 = vpack.c.b16 %v384, %v382
        %v441 = vpack.c.b16 %v387, %v385
        %v442 = vpack.c.b16 %v388, %v386
        %v443 = vpack.c.b16 %v391, %v389
        %v444 = vpack.c.b16 %v392, %v390
        %v445 = vpack.c.b16 %v395, %v393
        %v446 = vpack.c.b16 %v396, %v394
        %v447 = vpack.c.b16 %v399, %v397
        %v448 = vpack.c.b16 %v400, %v398
        %v449 = vpack.c.b16 %v403, %v401
        %v450 = vpack.c.b16 %v404, %v402
        %v451 = vpack.c.b16 %v407, %v405
        %v452 = vpack.c.b16 %v408, %v406
        %v453 = vpack.c.b16 %v411, %v409
        %v454 = vpack.c.b16 %v412, %v410
        %v455 = vpack.c.b16 %v415, %v413
        %v456 = vpack.c.b16 %v416, %v414
        %v457 = vpack.c.b16 %v419, %v417
        %v458 = vpack.c.b16 %v420, %v418
        %v459 = vpack.c.b16 %v423, %v421
        %v460 = vpack.c.b16 %v424, %v422
        %v461 = vpack.c.b16 %v427, %v425
        %v462 = vpack.c.b16 %v428, %v426
        %v463 = vpack.c.b16 %v431, %v429
        %v464 = vpack.c.b16 %v432, %v430
        %497 = vmatprep.subr.bf16.mxu0 %v434
        %498 = vmatpush1.bf16.msra.mxu0 %v433
        %499 = vmatprep.subr.bf16.mxu0 %v436
        %500 = vmatpush1.bf16.msra.mxu0 %v435
        %501 = vmatprep.subr.bf16.mxu0 %v438
        %502 = vmatpush1.bf16.msra.mxu0 %v437
        %503 = vmatprep.subr.bf16.mxu0 %v440
        %504 = vmatpush1.bf16.msra.mxu0 %v439
        %505 = vmatprep.subr.bf16.mxu0 %v442
        %506 = vmatpush1.bf16.msra.mxu0 %v441
        %507 = vmatprep.subr.bf16.mxu0 %v444
        %508 = vmatpush1.bf16.msra.mxu0 %v443
        %509 = vmatprep.subr.bf16.mxu0 %v446
        %510 = vmatpush1.bf16.msra.mxu0 %v445
        %511 = vmatprep.subr.bf16.mxu0 %v448
        %512 = vmatpush1.bf16.msra.mxu0 %v447
        %513 = vmatprep.subr.bf16.mxu0 %v450
        %514 = vmatpush1.bf16.msra.mxu0 %v449
        %515 = vmatprep.subr.bf16.mxu0 %v452
        %516 = vmatpush1.bf16.msra.mxu0 %v451
        %517 = vmatprep.subr.bf16.mxu0 %v454
        %518 = vmatpush1.bf16.msra.mxu0 %v453
        %519 = vmatprep.subr.bf16.mxu0 %v456
        %520 = vmatpush1.bf16.msra.mxu0 %v455
        %521 = vmatprep.subr.bf16.mxu0 %v458
        %522 = vmatpush1.bf16.msra.mxu0 %v457
        %523 = vmatprep.subr.bf16.mxu0 %v460
        %524 = vmatpush1.bf16.msra.mxu0 %v459
        %525 = vmatprep.subr.bf16.mxu0 %v462
        %526 = vmatpush1.bf16.msra.mxu0 %v461
        %527 = vmatprep.subr.bf16.mxu0 %v464
        %528 = vmatpush1.bf16.msra.mxu0 %v463
        %529 = vmatprep.mubr.bf16.mxu0 %v334
        %530 = vmatmul.mubr.bf16.gmra.mrb[0].mxu0 %v333
        %v531 = vpop.f32.mrb[0].mxu0
        %v532 = vadd.f32 0.0, %v531
        %v533 = vpop.f32.mrb[0].mxu0
        %v534 = vadd.f32 0.0, %v533
        %v535 = vpop.f32.mrb[0].mxu0
        %v536 = vadd.f32 0.0, %v535
        %v537 = vpop.f32.mrb[0].mxu0
        %v538 = vadd.f32 0.0, %v537
        %539 = vdwg.mxu0
        %v540 = vxor.u32 %v532, 2147483648
        %v541 = vxor.u32 %v536, 2147483648
        %v542 = vmul.f32 %v540, 1.442695
        %v543 = vpow.pop %v542
        %v544 = vmul.f32 %v541, 1.442695
        %v545 = vpow.pop %v544
        %v546 = vadd.f32 %v543, 1.0
        %v547 = vadd.f32 %v545, 1.0
        %v548 = vrcp.pop %v546
        %v549 = vmul.f32 1.0, %v548
        %v550 = vrcp.pop %v547
        %v551 = vmul.f32 1.0, %v550
        %v552 = vmul.f32 %v532, %v549
        %v553 = vmul.f32 %v536, %v551
        %v554 = vmul.f32 %v552, %v534
        %v555 = vmul.f32 %v553, %v538
        %v556 = vpack.c.bf16 %v555, %v554
        %v557 = vld [vmem:[%s247] sm:$0xff]
        %v558 = vld [vmem:[%s247 + $0x8] sm:$0xff]
        %v559 = vld [vmem:[%s247 + $0x10] sm:$0xff]
        %v560 = vld [vmem:[%s247 + $0x18] sm:$0xff]
        %v561 = vld [vmem:[%s247 + $0x20] sm:$0xff]
        %v562 = vld [vmem:[%s247 + $0x28] sm:$0xff]
        %v563 = vld [vmem:[%s247 + $0x30] sm:$0xff]
        %v564 = vld [vmem:[%s247 + $0x38] sm:$0xff]
        %v565 = vld [vmem:[%s247 + $0x40] sm:$0xff]
        %v566 = vld [vmem:[%s247 + $0x48] sm:$0xff]
        %v567 = vld [vmem:[%s247 + $0x50] sm:$0xff]
        %v568 = vld [vmem:[%s247 + $0x58] sm:$0xff]
        %v569 = vld [vmem:[%s247 + $0x60] sm:$0xff]
        %v570 = vld [vmem:[%s247 + $0x68] sm:$0xff]
        %v571 = vld [vmem:[%s247 + $0x70] sm:$0xff]
        %v572 = vld [vmem:[%s247 + $0x78] sm:$0xff]
        %v589 = vunpack.c.l.b16 %v557
        %v590 = vunpack.c.h.b16 %v557
        %v591 = vunpack.c.l.b16 %v558
        %v592 = vunpack.c.h.b16 %v558
        %v593 = vunpack.c.l.b16 %v559
        %v594 = vunpack.c.h.b16 %v559
        %v595 = vunpack.c.l.b16 %v560
        %v596 = vunpack.c.h.b16 %v560
        %v597 = vunpack.c.l.b16 %v561
        %v598 = vunpack.c.h.b16 %v561
        %v599 = vunpack.c.l.b16 %v562
        %v600 = vunpack.c.h.b16 %v562
        %v601 = vunpack.c.l.b16 %v563
        %v602 = vunpack.c.h.b16 %v563
        %v603 = vunpack.c.l.b16 %v564
        %v604 = vunpack.c.h.b16 %v564
        %v605 = vunpack.c.l.b16 %v565
        %v606 = vunpack.c.h.b16 %v565
        %v607 = vunpack.c.l.b16 %v566
        %v608 = vunpack.c.h.b16 %v566
        %v609 = vunpack.c.l.b16 %v567
        %v610 = vunpack.c.h.b16 %v567
        %v611 = vunpack.c.l.b16 %v568
        %v612 = vunpack.c.h.b16 %v568
        %v613 = vunpack.c.l.b16 %v569
        %v614 = vunpack.c.h.b16 %v569
        %v615 = vunpack.c.l.b16 %v570
        %v616 = vunpack.c.h.b16 %v570
        %v617 = vunpack.c.l.b16 %v571
        %v618 = vunpack.c.h.b16 %v571
        %v619 = vunpack.c.l.b16 %v572
        %v620 = vunpack.c.h.b16 %v572
        %v621 = vpack.c.b16 %v591, %v589
        %v622 = vpack.c.b16 %v592, %v590
        %v623 = vpack.c.b16 %v595, %v593
        %v624 = vpack.c.b16 %v596, %v594
        %v625 = vpack.c.b16 %v599, %v597
        %v626 = vpack.c.b16 %v600, %v598
        %v627 = vpack.c.b16 %v603, %v601
        %v628 = vpack.c.b16 %v604, %v602
        %v629 = vpack.c.b16 %v607, %v605
        %v630 = vpack.c.b16 %v608, %v606
        %v631 = vpack.c.b16 %v611, %v609
        %v632 = vpack.c.b16 %v612, %v610
        %v633 = vpack.c.b16 %v615, %v613
        %v634 = vpack.c.b16 %v616, %v614
        %v635 = vpack.c.b16 %v619, %v617
        %v636 = vpack.c.b16 %v620, %v618
        %653 = vmatprep.subr.bf16.mxu0 %v622
        %654 = vmatpush1.bf16.msra.mxu0 %v621
        %655 = vmatprep.subr.bf16.mxu0 %v624
        %656 = vmatpush1.bf16.msra.mxu0 %v623
        %657 = vmatprep.subr.bf16.mxu0 %v626
        %658 = vmatpush1.bf16.msra.mxu0 %v625
        %659 = vmatprep.subr.bf16.mxu0 %v628
        %660 = vmatpush1.bf16.msra.mxu0 %v627
        %661 = vmatprep.subr.bf16.mxu0 %v630
        %662 = vmatpush1.bf16.msra.mxu0 %v629
        %663 = vmatprep.subr.bf16.mxu0 %v632
        %664 = vmatpush1.bf16.msra.mxu0 %v631
        %665 = vmatprep.subr.bf16.mxu0 %v634
        %666 = vmatpush1.bf16.msra.mxu0 %v633
        %667 = vmatprep.subr.bf16.mxu0 %v636
        %668 = vmatpush1.bf16.msra.mxu0 %v635
        %669 = vmatprep.subr.bf16.mxu0 0
        %670 = vmatpush1.bf16.msra.mxu0 0
        %671 = vmatprep.subr.bf16.mxu0 0
        %672 = vmatpush1.bf16.msra.mxu0 0
        %673 = vmatprep.subr.bf16.mxu0 0
        %674 = vmatpush1.bf16.msra.mxu0 0
        %675 = vmatprep.subr.bf16.mxu0 0
        %676 = vmatpush1.bf16.msra.mxu0 0
        %677 = vmatprep.subr.bf16.mxu0 0
        %678 = vmatpush1.bf16.msra.mxu0 0
        %679 = vmatprep.subr.bf16.mxu0 0
        %680 = vmatpush1.bf16.msra.mxu0 0
        %681 = vmatprep.subr.bf16.mxu0 0
        %682 = vmatpush1.bf16.msra.mxu0 0
        %683 = vmatprep.subr.bf16.mxu0 0
        %684 = vmatpush1.bf16.msra.mxu0 0
        %685 = vmatprep.mubr.bf16.mxu0 0
        %686 = vmatmul.mubr.bf16.gmra.mrb[0].mxu0 %v556
        %v687 = vpop.f32.mrb[0].mxu0
        %v688 = vadd.f32 0.0, %v687
        %v689 = vpop.f32.mrb[0].mxu0
        %v690 = vadd.f32 0.0, %v689
        %v691 = vpop.f32.mrb[0].mxu0
        %v692 = vadd.f32 0.0, %v691
        %v693 = vpop.f32.mrb[0].mxu0
        %v694 = vadd.f32 0.0, %v693
        %695 = vdwg.mxu0
        %p696 = scmp.eq.s32.totalorder %s28, 3
        %p697 = scmp.ne.s32.totalorder %s28, 3
        // Predicated region
        $region49: #{tpu_custom_call.1} parent=31 // pred_check
          %p698 = pneg %p697
        $region50: #{tpu_custom_call.1} parent=31 // pred_check_branch
          %700 = sbr.rel (%p698) target = $region52
        $region51: #{tpu_custom_call.1} parent=31 // pred_region
          %v701 = vld [vmem:[#allocation2] sm:$0xff]
          %v702 = vld [vmem:[#allocation2 + $0x8] sm:$0xff]
          %v703 = vld [vmem:[#allocation2 + $0x10] sm:$0xff]
          %v704 = vld [vmem:[#allocation2 + $0x18] sm:$0xff]
          %v705 = vadd.f32 %v701, %v688
          %v706 = vadd.f32 %v702, %v690
          %v707 = vadd.f32 %v703, %v692
          %v708 = vadd.f32 %v704, %v694
          %709 = vst [vmem:[#allocation2] sm:$0xff] %v705
          %710 = vst [vmem:[#allocation2 + $0x8] sm:$0xff] %v706
          %711 = vst [vmem:[#allocation2 + $0x10] sm:$0xff] %v707
          %712 = vst [vmem:[#allocation2 + $0x18] sm:$0xff] %v708
        $region52: #{tpu_custom_call.1} parent=31 // pred_fallthru
          _
        // Predicated region
        $region53: #{tpu_custom_call.1} parent=31 // pred_check
          %p713 = pneg %p696
        $region54: #{tpu_custom_call.1} parent=31 // pred_check_branch
          %715 = sbr.rel (%p713) target = $region56
        $region55: #{tpu_custom_call.1} parent=31 // pred_region
          %v716 = vld [vmem:[#allocation2] sm:$0xff]
          %v717 = vld [vmem:[#allocation2 + $0x8] sm:$0xff]
          %v718 = vld [vmem:[#allocation2 + $0x10] sm:$0xff]
          %v719 = vld [vmem:[#allocation2 + $0x18] sm:$0xff]
          %v720 = vadd.f32 %v716, %v688
          %v721 = vadd.f32 %v717, %v690
          %v722 = vadd.f32 %v718, %v692
          %v723 = vadd.f32 %v719, %v694
          %v724 = vpack.c.bf16 %v722, %v720
          %v725 = vpack.c.bf16 %v723, %v721
          %v728 = vunpack.c.l.b16 %v724
          %v729 = vunpack.c.l.b16 %v725
          %v730 = vunpack.c.h.b16 %v724
          %v731 = vunpack.c.h.b16 %v725
          %v732 = vpack.c.b16 %v729, %v728
          %v733 = vpack.c.b16 %v731, %v730
          %736 = vst [vmem:[%s279] sm:$0xff] %v732
          %737 = vst [vmem:[%s279 + $0x8] sm:$0xff] %v733
        $region56: #{tpu_custom_call.1} parent=31 // pred_fallthru
          _
        %s738 = sand.u32 %s121, 1
        %s739 = scalar_lea.sflag [#allocation5], %s738
        %s740 = sand.u32 %s121, 1
        %s741 = smul.addr %s740, 16
        %s742 = scalar_lea.vmem [#allocation9], %s741
        // Predicated region
        $region57: #{tpu_custom_call.1} parent=31 // pred_check
          %p743 = pneg %p131
        $region58: #{tpu_custom_call.1} parent=31 // pred_check_branch
          %745 = sbr.rel (%p743) target = $region60
        $region59: #{tpu_custom_call.1} parent=31 // pred_region
          %s746 = smul.u32 2, %s27
          %s748 = ssub.s32 256, 256
          %749 = vsyncadd %s739, %s748
          %s750 = smul.addr %s746, 2
          %s751 = smul.addr %s750, 64
          %s752 = scalar_lea.hbm %s3, %s751
          %s753 = sshll.u32 %s742, 4
          %s754 = int_to_ptr.vmem [resolvable:$true] %s753
          %759 = dma.vmem_to_hbm [thread:$0]  %s754, 256, %s752, %s739, 128, 128, 8
        $region60: #{tpu_custom_call.1} parent=31 // pred_fallthru
          _
      $region32: #{tpu_custom_call.1} parent=5 // pred_fallthru
        _
      %p760 = scmp.le.s32.totalorder 2, %s18
      // Predicated region
      $region61: #{tpu_custom_call.1} parent=5 // pred_check
        %p761 = pneg %p760
      $region62: #{tpu_custom_call.1} parent=5 // pred_check_branch
        %763 = sbr.rel (%p761) target = $region64
      $region63: #{tpu_custom_call.1} parent=5 // pred_region
        %s764 = ssub.s32 %s18, 2
        // Predicated region
        $region65: #{tpu_custom_call.1} parent=63 // pred_check
          %p765 = pneg %p137
        $region66: #{tpu_custom_call.1} parent=63 // pred_check_branch
          %767 = sbr.rel (%p765) target = $region68
        $region67: #{tpu_custom_call.1} parent=63 // pred_region
          %s768 = sand.u32 %s122, 1
          %s769 = scalar_lea.sflag [#allocation5], %s768
          %s770 = sand.u32 %s122, 1
          %s771 = smul.addr %s770, 16
          %s772 = scalar_lea.vmem [#allocation9], %s771
          %773 = dma.done %s769, 256
        $region68: #{tpu_custom_call.1} parent=63 // pred_fallthru
          _
      $region64: #{tpu_custom_call.1} parent=5 // pred_fallthru
        _
    $region6: #{tpu_custom_call.1} parent=1 // loop_footer
      %s22 = sadd.s32 1, %s18
    $region7: #{tpu_custom_call.1} parent=1 // loop_footer_branch
      %17 = sbr.rel target = $region3
    $region8: #{tpu_custom_call.1} parent=1 // loop_exit
      _
    %774 = vsyncpa [#allocation4], 1
    %s775 = scalar_lea.sflag [#allocation4], 1
    %776 = vsyncpa %s775, 1
    %777 = vsyncpa [#allocation7], 1
    %s778 = scalar_lea.sflag [#allocation7], 1
    %779 = vsyncpa %s778, 1
    %780 = vsyncpa [#allocation5], 1
    %s781 = scalar_lea.sflag [#allocation5], 1
    %782 = vsyncpa %s781, 1

</llo_original>
